<compile_context>
chip_gen: v7x
topology: tpu7x:2x2x1
jax: 0.10.0
libtpu: 0.0.40
codegen_flags: <defaults>
</compile_context>

<pallas_src>
import functools

import jax
import jax.numpy as jnp
from jax.experimental import pallas as pl
from jax.experimental.pallas import tpu as pltpu

N_LAYERS = 2
SUBLANES = 8


def _lstm_fc_kernel(
    x2d_ref,              # (T*B, I)   time-major flattened inputs
    h0_ref, c0_ref,       # (2, B, H)  initial hidden / cell
    wih0_ref,             # (I, 4H)    layer-0 input weights (transposed)
    whh0_ref,             # (H, 4H)    layer-0 recurrent weights (transposed)
    b0_ref,               # (1, 4H)    b_ih0 + b_hh0
    wih1_ref,             # (H, 4H)    layer-1 input weights (transposed)
    whh1_ref,             # (H, 4H)    layer-1 recurrent weights (transposed)
    b1_ref,               # (1, 4H)    b_ih1 + b_hh1
    wfc_ref, bfc_ref,     # (H, O), (1, O)
    out_ref,              # (B, O)
    hN_ref, cN_ref,       # (2, B, H)  final hidden / cell
    h1_scr,               # (T*B, H)   VMEM scratch: layer-0 outputs, all steps
    *, seq_len, batch, hidden_size,
):
    T, B, H = seq_len, batch, hidden_size

    def gate_act(gates):
        # Dense EUP passes over the whole (B, 4H) slab, then per-gate extracts.
        sg = jax.nn.sigmoid(gates)
        th = jnp.tanh(gates)
        i = sg[:, 0 * H:1 * H]
        f = sg[:, 1 * H:2 * H]
        g = th[:, 2 * H:3 * H]
        o = sg[:, 3 * H:4 * H]
        return i, f, g, o

    # ---- layer 0 ----
    # Hoisted input projection (+ folded bias): one MXU launch for all steps.
    gx0 = jnp.dot(x2d_ref[...], wih0_ref[...],
                  preferred_element_type=jnp.float32) + b0_ref[...]
    whh0_T = whh0_ref[...]

    h1, c1 = h0_ref[0], c0_ref[0]
    for t in range(T):  # T small & static -> fully unrolled, state in vregs
        g0 = gx0[t * B:(t + 1) * B, :] + jnp.dot(
            h1, whh0_T, preferred_element_type=jnp.float32)
        i0, f0, gg0, o0 = gate_act(g0)
        c1 = f0 * c1 + i0 * gg0
        h1 = o0 * jnp.tanh(c1)
        h1_scr[t * B:(t + 1) * B, :] = h1        # aligned 8-row store

    # ---- layer 1 ----
    # Layer-1 input projection over ALL timesteps in one MXU launch, off the
    # serial recurrence path.
    gx1 = jnp.dot(h1_scr[...], wih1_ref[...],
                  preferred_element_type=jnp.float32) + b1_ref[...]
    whh1_T = whh1_ref[...]

    h2, c2 = h0_ref[1], c0_ref[1]
    for t in range(T):
        g1 = gx1[t * B:(t + 1) * B, :] + jnp.dot(
            h2, whh1_T, preferred_element_type=jnp.float32)
        i1, f1, gg1, o1 = gate_act(g1)
        c2 = f1 * c2 + i1 * gg1
        h2 = o1 * jnp.tanh(c2)

    # fc(out[:, -1, :]) and final states, written once at the end.
    out_ref[...] = jnp.dot(h2, wfc_ref[...],
                           preferred_element_type=jnp.float32) + bfc_ref[...]
    hN_ref[0] = h1
    hN_ref[1] = h2
    cN_ref[0] = c1
    cN_ref[1] = c2


def lstm_character_predictor_forward(x, hidden, params):
    """x: (B, T, I) batch_first (PyTorch convention). hidden: (h0, c0), each (2, B, H)."""
    h0, c0 = hidden
    B, T, I = x.shape
    H = params["whh0"].shape[1]          # (4H, H)
    O = params["wfc"].shape[0]           # (O, H)
    Bp = ((B + SUBLANES - 1) // SUBLANES) * SUBLANES   # pad batch to sublane group

    # ---- batch padding (zero rows; sliced off from the outputs below) ----
    x_p = jnp.pad(x, ((0, Bp - B), (0, 0), (0, 0)))
    h0_p = jnp.pad(h0, ((0, 0), (0, Bp - B), (0, 0)))
    c0_p = jnp.pad(c0, ((0, 0), (0, Bp - B), (0, 0)))

    # Time-major, flattened to (T*Bp, I): rows [t*Bp, (t+1)*Bp) hold timestep t,
    # so the layer-0 input projection is one matmul in the kernel preamble.
    x2d = jnp.transpose(x_p, (1, 0, 2)).reshape(T * Bp, I)

    # ---- weight preprocessing: transpose for row-major matmuls, fold biases ----
    wih0_T = params["wih0"].T                                        # (I, 4H)
    whh0_T = params["whh0"].T                                        # (H, 4H)
    b0 = (params["bih0"] + params["bhh0"]).reshape(1, 4 * H)
    wih1_T = params["wih1"].T                                        # (H, 4H)
    whh1_T = params["whh1"].T                                        # (H, 4H)
    b1 = (params["bih1"] + params["bhh1"]).reshape(1, 4 * H)
    wfc_T = params["wfc"].T                                          # (H, O)
    bfc = params["bfc"].reshape(1, O)

    kernel = functools.partial(_lstm_fc_kernel, seq_len=T, batch=Bp, hidden_size=H)
    vmem = pl.BlockSpec(memory_space=pltpu.MemorySpace.VMEM)

    out_p, hN_p, cN_p = pl.pallas_call(
        kernel,
        out_shape=(
            jax.ShapeDtypeStruct((Bp, O), jnp.float32),
            jax.ShapeDtypeStruct((N_LAYERS, Bp, H), jnp.float32),
            jax.ShapeDtypeStruct((N_LAYERS, Bp, H), jnp.float32),
        ),
        in_specs=[vmem] * 11,
        out_specs=(vmem, vmem, vmem),
        scratch_shapes=[pltpu.VMEM((T * Bp, H), jnp.float32)],
    )(x2d, h0_p, c0_p, wih0_T, whh0_T, b0, wih1_T, whh1_T, b1, wfc_T, bfc)

    return out_p[:B], (hN_p[:, :B], cN_p[:, :B])


# ----------------------------- pure-JAX reference ---------------------------
def _reference_forward(x, hidden, params):
    h0, c0 = hidden
    B, T, I = x.shape
    H = params["whh0"].shape[1]

    def cell(x_t, h, c, wih, whh, bih, bhh):
        g = x_t @ wih.T + bih + h @ whh.T + bhh
        i = jax.nn.sigmoid(g[:, 0 * H:1 * H])
        f = jax.nn.sigmoid(g[:, 1 * H:2 * H])
        gg = jnp.tanh(g[:, 2 * H:3 * H])
        o = jax.nn.sigmoid(g[:, 3 * H:4 * H])
        c_new = f * c + i * gg
        return o * jnp.tanh(c_new), c_new

    h1, c1, h2, c2 = h0[0], c0[0], h0[1], c0[1]
    for t in range(T):
        h1, c1 = cell(x[:, t, :], h1, c1,
                      params["wih0"], params["whh0"], params["bih0"], params["bhh0"])
        h2, c2 = cell(h1, h2, c2,
                      params["wih1"], params["whh1"], params["bih1"], params["bhh1"])
    out = h2 @ params["wfc"].T + params["bfc"]
    return out, (jnp.stack([h1, h2]), jnp.stack([c1, c2]))


# ----------------------------------- main ------------------------------------
if __name__ == "__main__":
    B, T = 2, 8
    input_size, hidden_size, output_size = 16, 32, 16

    key = jax.random.PRNGKey(0)
    k = 1.0 / jnp.sqrt(hidden_size)

    def u(key, shape, bound):
        return jax.random.uniform(key, shape, jnp.float32, -bound, bound)

    keys = jax.random.split(key, 12)
    params = {
        "wih0": u(keys[0], (4 * hidden_size, input_size), k),
        "whh0": u(keys[1], (4 * hidden_size, hidden_size), k),
        "bih0": u(keys[2], (4 * hidden_size,), k),
        "bhh0": u(keys[3], (4 * hidden_size,), k),
        "wih1": u(keys[4], (4 * hidden_size, hidden_size), k),
        "whh1": u(keys[5], (4 * hidden_size, hidden_size), k),
        "bih1": u(keys[6], (4 * hidden_size,), k),
        "bhh1": u(keys[7], (4 * hidden_size,), k),
        "wfc": u(keys[8], (output_size, hidden_size), 1.0 / jnp.sqrt(hidden_size)),
        "bfc": u(keys[9], (output_size,), 1.0 / jnp.sqrt(hidden_size)),
    }

    x = jax.random.normal(keys[10], (B, T, input_size), jnp.float32)
    # init_hidden(batch_size) -> zeros
    h0 = jnp.zeros((N_LAYERS, B, hidden_size), jnp.float32)
    c0 = jnp.zeros((N_LAYERS, B, hidden_size), jnp.float32)

    out, (hN, cN) = lstm_character_predictor_forward(x, (h0, c0), params)
    out = jax.block_until_ready(out)
    hN = jax.block_until_ready(hN)
    cN = jax.block_until_ready(cN)

    ref_out, (ref_hN, ref_cN) = _reference_forward(x, (h0, c0), params)
    assert jnp.allclose(out, ref_out, atol=1e-5), "fc output mismatch"
    assert jnp.allclose(hN, ref_hN, atol=1e-5), "hidden state mismatch"
    assert jnp.allclose(cN, ref_cN, atol=1e-5), "cell state mismatch"

    print("KERNEL_OK")
</pallas_src>

<mosaic_0001>
module attributes {stable_mosaic.version = 11 : i64} {
  func.func @_lstm_fc_kernel(%arg0: memref<64x16xf32, #tpu.memory_space<vmem>>, %arg1: memref<2x8x32xf32, #tpu.memory_space<vmem>>, %arg2: memref<2x8x32xf32, #tpu.memory_space<vmem>>, %arg3: memref<16x128xf32, #tpu.memory_space<vmem>>, %arg4: memref<32x128xf32, #tpu.memory_space<vmem>>, %arg5: memref<1x128xf32, #tpu.memory_space<vmem>>, %arg6: memref<32x128xf32, #tpu.memory_space<vmem>>, %arg7: memref<32x128xf32, #tpu.memory_space<vmem>>, %arg8: memref<1x128xf32, #tpu.memory_space<vmem>>, %arg9: memref<32x16xf32, #tpu.memory_space<vmem>>, %arg10: memref<1x16xf32, #tpu.memory_space<vmem>>, %arg11: memref<8x16xf32, #tpu.memory_space<vmem>>, %arg12: memref<2x8x32xf32, #tpu.memory_space<vmem>>, %arg13: memref<2x8x32xf32, #tpu.memory_space<vmem>>, %arg14: memref<64x32xf32, #tpu.memory_space<vmem>>) attributes {dimension_semantics = [], scalar_prefetch = 0 : i64, scratch_operands = 1 : i64, tpu.core_type = #tpu.core_type<tc>} {
    %c0 = arith.constant 0 : index
    %c0_0 = arith.constant 0 : index
    %0 = vector.load %arg0[%c0, %c0_0] : memref<64x16xf32, #tpu.memory_space<vmem>>, vector<64x16xf32>
    %c0_1 = arith.constant 0 : index
    %c0_2 = arith.constant 0 : index
    %1 = vector.load %arg3[%c0_1, %c0_2] : memref<16x128xf32, #tpu.memory_space<vmem>>, vector<16x128xf32>
    %cst = arith.constant dense<0.000000e+00> : vector<64x128xf32>
    %2 = tpu.matmul %0, %1, %cst {dimension_numbers = #tpu.dot_dimension_numbers<[1], [0], [0], [1], [0, 0, 1, 1], [], []>} : vector<64x16xf32>, vector<16x128xf32>, vector<64x128xf32> -> vector<64x128xf32>
    %c0_3 = arith.constant 0 : index
    %c0_4 = arith.constant 0 : index
    %3 = vector.load %arg5[%c0_3, %c0_4] : memref<1x128xf32, #tpu.memory_space<vmem>>, vector<1x128xf32>
    %4 = vector.broadcast %3 : vector<1x128xf32> to vector<64x128xf32>
    %5 = arith.addf %2, %4 : vector<64x128xf32>
    %c0_5 = arith.constant 0 : index
    %c0_6 = arith.constant 0 : index
    %6 = vector.load %arg4[%c0_5, %c0_6] : memref<32x128xf32, #tpu.memory_space<vmem>>, vector<32x128xf32>
    %c0_7 = arith.constant 0 : index
    %c0_8 = arith.constant 0 : index
    %c0_9 = arith.constant 0 : index
    %7 = vector.load %arg1[%c0_7, %c0_8, %c0_9] : memref<2x8x32xf32, #tpu.memory_space<vmem>>, vector<1x8x32xf32>
    %8 = vector.shape_cast %7 : vector<1x8x32xf32> to vector<8x32xf32>
    %c0_10 = arith.constant 0 : index
    %c0_11 = arith.constant 0 : index
    %c0_12 = arith.constant 0 : index
    %9 = vector.load %arg2[%c0_10, %c0_11, %c0_12] : memref<2x8x32xf32, #tpu.memory_space<vmem>>, vector<1x8x32xf32>
    %10 = vector.shape_cast %9 : vector<1x8x32xf32> to vector<8x32xf32>
    %11 = vector.extract_strided_slice %5 {offsets = [0, 0], sizes = [8, 128], strides = [1, 1]} : vector<64x128xf32> to vector<8x128xf32>
    %cst_13 = arith.constant dense<0.000000e+00> : vector<8x128xf32>
    %12 = tpu.matmul %8, %6, %cst_13 {dimension_numbers = #tpu.dot_dimension_numbers<[1], [0], [0], [1], [0, 0, 1, 1], [], []>} : vector<8x32xf32>, vector<32x128xf32>, vector<8x128xf32> -> vector<8x128xf32>
    %13 = arith.addf %11, %12 : vector<8x128xf32>
    %14 = arith.negf %13 : vector<8x128xf32>
    %15 = math.exp %14 : vector<8x128xf32>
    %cst_14 = arith.constant 1.000000e+00 : f32
    %16 = vector.broadcast %cst_14 : f32 to vector<8x128xf32>
    %17 = arith.addf %16, %15 : vector<8x128xf32>
    %18 = arith.divf %16, %17 : vector<8x128xf32>
    %19 = math.tanh %13 : vector<8x128xf32>
    %20 = vector.extract_strided_slice %18 {offsets = [0, 0], sizes = [8, 32], strides = [1, 1]} : vector<8x128xf32> to vector<8x32xf32>
    %21 = vector.extract_strided_slice %18 {offsets = [0, 32], sizes = [8, 32], strides = [1, 1]} : vector<8x128xf32> to vector<8x32xf32>
    %22 = vector.extract_strided_slice %19 {offsets = [0, 64], sizes = [8, 32], strides = [1, 1]} : vector<8x128xf32> to vector<8x32xf32>
    %23 = vector.extract_strided_slice %18 {offsets = [0, 96], sizes = [8, 32], strides = [1, 1]} : vector<8x128xf32> to vector<8x32xf32>
    %24 = arith.mulf %21, %10 : vector<8x32xf32>
    %25 = arith.mulf %20, %22 : vector<8x32xf32>
    %26 = arith.addf %24, %25 : vector<8x32xf32>
    %27 = math.tanh %26 : vector<8x32xf32>
    %28 = arith.mulf %23, %27 : vector<8x32xf32>
    %c0_15 = arith.constant 0 : index
    %c0_16 = arith.constant 0 : index
    %29 = vector.load %arg14[%c0_15, %c0_16] : memref<64x32xf32, #tpu.memory_space<vmem>>, vector<8x32xf32>
    tpu.vector_store %arg14[%c0_15, %c0_16], %28 {strides = array<i32>} : memref<64x32xf32, #tpu.memory_space<vmem>>, vector<8x32xf32>,
    %30 = vector.extract_strided_slice %5 {offsets = [8, 0], sizes = [8, 128], strides = [1, 1]} : vector<64x128xf32> to vector<8x128xf32>
    %cst_17 = arith.constant dense<0.000000e+00> : vector<8x128xf32>
    %31 = tpu.matmul %28, %6, %cst_17 {dimension_numbers = #tpu.dot_dimension_numbers<[1], [0], [0], [1], [0, 0, 1, 1], [], []>} : vector<8x32xf32>, vector<32x128xf32>, vector<8x128xf32> -> vector<8x128xf32>
    %32 = arith.addf %30, %31 : vector<8x128xf32>
    %33 = arith.negf %32 : vector<8x128xf32>
    %34 = math.exp %33 : vector<8x128xf32>
    %cst_18 = arith.constant 1.000000e+00 : f32
    %35 = vector.broadcast %cst_18 : f32 to vector<8x128xf32>
    %36 = arith.addf %35, %34 : vector<8x128xf32>
    %37 = arith.divf %35, %36 : vector<8x128xf32>
    %38 = math.tanh %32 : vector<8x128xf32>
    %39 = vector.extract_strided_slice %37 {offsets = [0, 0], sizes = [8, 32], strides = [1, 1]} : vector<8x128xf32> to vector<8x32xf32>
    %40 = vector.extract_strided_slice %37 {offsets = [0, 32], sizes = [8, 32], strides = [1, 1]} : vector<8x128xf32> to vector<8x32xf32>
    %41 = vector.extract_strided_slice %38 {offsets = [0, 64], sizes = [8, 32], strides = [1, 1]} : vector<8x128xf32> to vector<8x32xf32>
    %42 = vector.extract_strided_slice %37 {offsets = [0, 96], sizes = [8, 32], strides = [1, 1]} : vector<8x128xf32> to vector<8x32xf32>
    %43 = arith.mulf %40, %26 : vector<8x32xf32>
    %44 = arith.mulf %39, %41 : vector<8x32xf32>
    %45 = arith.addf %43, %44 : vector<8x32xf32>
    %46 = math.tanh %45 : vector<8x32xf32>
    %47 = arith.mulf %42, %46 : vector<8x32xf32>
    %c8 = arith.constant 8 : index
    %c0_19 = arith.constant 0 : index
    %48 = vector.load %arg14[%c8, %c0_19] : memref<64x32xf32, #tpu.memory_space<vmem>>, vector<8x32xf32>
    tpu.vector_store %arg14[%c8, %c0_19], %47 {strides = array<i32>} : memref<64x32xf32, #tpu.memory_space<vmem>>, vector<8x32xf32>,
    %49 = vector.extract_strided_slice %5 {offsets = [16, 0], sizes = [8, 128], strides = [1, 1]} : vector<64x128xf32> to vector<8x128xf32>
    %cst_20 = arith.constant dense<0.000000e+00> : vector<8x128xf32>
    %50 = tpu.matmul %47, %6, %cst_20 {dimension_numbers = #tpu.dot_dimension_numbers<[1], [0], [0], [1], [0, 0, 1, 1], [], []>} : vector<8x32xf32>, vector<32x128xf32>, vector<8x128xf32> -> vector<8x128xf32>
    %51 = arith.addf %49, %50 : vector<8x128xf32>
    %52 = arith.negf %51 : vector<8x128xf32>
    %53 = math.exp %52 : vector<8x128xf32>
    %cst_21 = arith.constant 1.000000e+00 : f32
    %54 = vector.broadcast %cst_21 : f32 to vector<8x128xf32>
    %55 = arith.addf %54, %53 : vector<8x128xf32>
    %56 = arith.divf %54, %55 : vector<8x128xf32>
    %57 = math.tanh %51 : vector<8x128xf32>
    %58 = vector.extract_strided_slice %56 {offsets = [0, 0], sizes = [8, 32], strides = [1, 1]} : vector<8x128xf32> to vector<8x32xf32>
    %59 = vector.extract_strided_slice %56 {offsets = [0, 32], sizes = [8, 32], strides = [1, 1]} : vector<8x128xf32> to vector<8x32xf32>
    %60 = vector.extract_strided_slice %57 {offsets = [0, 64], sizes = [8, 32], strides = [1, 1]} : vector<8x128xf32> to vector<8x32xf32>
    %61 = vector.extract_strided_slice %56 {offsets = [0, 96], sizes = [8, 32], strides = [1, 1]} : vector<8x128xf32> to vector<8x32xf32>
    %62 = arith.mulf %59, %45 : vector<8x32xf32>
    %63 = arith.mulf %58, %60 : vector<8x32xf32>
    %64 = arith.addf %62, %63 : vector<8x32xf32>
    %65 = math.tanh %64 : vector<8x32xf32>
    %66 = arith.mulf %61, %65 : vector<8x32xf32>
    %c16 = arith.constant 16 : index
    %c0_22 = arith.constant 0 : index
    %67 = vector.load %arg14[%c16, %c0_22] : memref<64x32xf32, #tpu.memory_space<vmem>>, vector<8x32xf32>
    tpu.vector_store %arg14[%c16, %c0_22], %66 {strides = array<i32>} : memref<64x32xf32, #tpu.memory_space<vmem>>, vector<8x32xf32>,
    %68 = vector.extract_strided_slice %5 {offsets = [24, 0], sizes = [8, 128], strides = [1, 1]} : vector<64x128xf32> to vector<8x128xf32>
    %cst_23 = arith.constant dense<0.000000e+00> : vector<8x128xf32>
    %69 = tpu.matmul %66, %6, %cst_23 {dimension_numbers = #tpu.dot_dimension_numbers<[1], [0], [0], [1], [0, 0, 1, 1], [], []>} : vector<8x32xf32>, vector<32x128xf32>, vector<8x128xf32> -> vector<8x128xf32>
    %70 = arith.addf %68, %69 : vector<8x128xf32>
    %71 = arith.negf %70 : vector<8x128xf32>
    %72 = math.exp %71 : vector<8x128xf32>
    %cst_24 = arith.constant 1.000000e+00 : f32
    %73 = vector.broadcast %cst_24 : f32 to vector<8x128xf32>
    %74 = arith.addf %73, %72 : vector<8x128xf32>
    %75 = arith.divf %73, %74 : vector<8x128xf32>
    %76 = math.tanh %70 : vector<8x128xf32>
    %77 = vector.extract_strided_slice %75 {offsets = [0, 0], sizes = [8, 32], strides = [1, 1]} : vector<8x128xf32> to vector<8x32xf32>
    %78 = vector.extract_strided_slice %75 {offsets = [0, 32], sizes = [8, 32], strides = [1, 1]} : vector<8x128xf32> to vector<8x32xf32>
    %79 = vector.extract_strided_slice %76 {offsets = [0, 64], sizes = [8, 32], strides = [1, 1]} : vector<8x128xf32> to vector<8x32xf32>
    %80 = vector.extract_strided_slice %75 {offsets = [0, 96], sizes = [8, 32], strides = [1, 1]} : vector<8x128xf32> to vector<8x32xf32>
    %81 = arith.mulf %78, %64 : vector<8x32xf32>
    %82 = arith.mulf %77, %79 : vector<8x32xf32>
    %83 = arith.addf %81, %82 : vector<8x32xf32>
    %84 = math.tanh %83 : vector<8x32xf32>
    %85 = arith.mulf %80, %84 : vector<8x32xf32>
    %c24 = arith.constant 24 : index
    %c0_25 = arith.constant 0 : index
    %86 = vector.load %arg14[%c24, %c0_25] : memref<64x32xf32, #tpu.memory_space<vmem>>, vector<8x32xf32>
    tpu.vector_store %arg14[%c24, %c0_25], %85 {strides = array<i32>} : memref<64x32xf32, #tpu.memory_space<vmem>>, vector<8x32xf32>,
    %87 = vector.extract_strided_slice %5 {offsets = [32, 0], sizes = [8, 128], strides = [1, 1]} : vector<64x128xf32> to vector<8x128xf32>
    %cst_26 = arith.constant dense<0.000000e+00> : vector<8x128xf32>
    %88 = tpu.matmul %85, %6, %cst_26 {dimension_numbers = #tpu.dot_dimension_numbers<[1], [0], [0], [1], [0, 0, 1, 1], [], []>} : vector<8x32xf32>, vector<32x128xf32>, vector<8x128xf32> -> vector<8x128xf32>
    %89 = arith.addf %87, %88 : vector<8x128xf32>
    %90 = arith.negf %89 : vector<8x128xf32>
    %91 = math.exp %90 : vector<8x128xf32>
    %cst_27 = arith.constant 1.000000e+00 : f32
    %92 = vector.broadcast %cst_27 : f32 to vector<8x128xf32>
    %93 = arith.addf %92, %91 : vector<8x128xf32>
    %94 = arith.divf %92, %93 : vector<8x128xf32>
    %95 = math.tanh %89 : vector<8x128xf32>
    %96 = vector.extract_strided_slice %94 {offsets = [0, 0], sizes = [8, 32], strides = [1, 1]} : vector<8x128xf32> to vector<8x32xf32>
    %97 = vector.extract_strided_slice %94 {offsets = [0, 32], sizes = [8, 32], strides = [1, 1]} : vector<8x128xf32> to vector<8x32xf32>
    %98 = vector.extract_strided_slice %95 {offsets = [0, 64], sizes = [8, 32], strides = [1, 1]} : vector<8x128xf32> to vector<8x32xf32>
    %99 = vector.extract_strided_slice %94 {offsets = [0, 96], sizes = [8, 32], strides = [1, 1]} : vector<8x128xf32> to vector<8x32xf32>
    %100 = arith.mulf %97, %83 : vector<8x32xf32>
    %101 = arith.mulf %96, %98 : vector<8x32xf32>
    %102 = arith.addf %100, %101 : vector<8x32xf32>
    %103 = math.tanh %102 : vector<8x32xf32>
    %104 = arith.mulf %99, %103 : vector<8x32xf32>
    %c32 = arith.constant 32 : index
    %c0_28 = arith.constant 0 : index
    %105 = vector.load %arg14[%c32, %c0_28] : memref<64x32xf32, #tpu.memory_space<vmem>>, vector<8x32xf32>
    tpu.vector_store %arg14[%c32, %c0_28], %104 {strides = array<i32>} : memref<64x32xf32, #tpu.memory_space<vmem>>, vector<8x32xf32>,
    %106 = vector.extract_strided_slice %5 {offsets = [40, 0], sizes = [8, 128], strides = [1, 1]} : vector<64x128xf32> to vector<8x128xf32>
    %cst_29 = arith.constant dense<0.000000e+00> : vector<8x128xf32>
    %107 = tpu.matmul %104, %6, %cst_29 {dimension_numbers = #tpu.dot_dimension_numbers<[1], [0], [0], [1], [0, 0, 1, 1], [], []>} : vector<8x32xf32>, vector<32x128xf32>, vector<8x128xf32> -> vector<8x128xf32>
    %108 = arith.addf %106, %107 : vector<8x128xf32>
    %109 = arith.negf %108 : vector<8x128xf32>
    %110 = math.exp %109 : vector<8x128xf32>
    %cst_30 = arith.constant 1.000000e+00 : f32
    %111 = vector.broadcast %cst_30 : f32 to vector<8x128xf32>
    %112 = arith.addf %111, %110 : vector<8x128xf32>
    %113 = arith.divf %111, %112 : vector<8x128xf32>
    %114 = math.tanh %108 : vector<8x128xf32>
    %115 = vector.extract_strided_slice %113 {offsets = [0, 0], sizes = [8, 32], strides = [1, 1]} : vector<8x128xf32> to vector<8x32xf32>
    %116 = vector.extract_strided_slice %113 {offsets = [0, 32], sizes = [8, 32], strides = [1, 1]} : vector<8x128xf32> to vector<8x32xf32>
    %117 = vector.extract_strided_slice %114 {offsets = [0, 64], sizes = [8, 32], strides = [1, 1]} : vector<8x128xf32> to vector<8x32xf32>
    %118 = vector.extract_strided_slice %113 {offsets = [0, 96], sizes = [8, 32], strides = [1, 1]} : vector<8x128xf32> to vector<8x32xf32>
    %119 = arith.mulf %116, %102 : vector<8x32xf32>
    %120 = arith.mulf %115, %117 : vector<8x32xf32>
    %121 = arith.addf %119, %120 : vector<8x32xf32>
    %122 = math.tanh %121 : vector<8x32xf32>
    %123 = arith.mulf %118, %122 : vector<8x32xf32>
    %c40 = arith.constant 40 : index
    %c0_31 = arith.constant 0 : index
    %124 = vector.load %arg14[%c40, %c0_31] : memref<64x32xf32, #tpu.memory_space<vmem>>, vector<8x32xf32>
    tpu.vector_store %arg14[%c40, %c0_31], %123 {strides = array<i32>} : memref<64x32xf32, #tpu.memory_space<vmem>>, vector<8x32xf32>,
    %125 = vector.extract_strided_slice %5 {offsets = [48, 0], sizes = [8, 128], strides = [1, 1]} : vector<64x128xf32> to vector<8x128xf32>
    %cst_32 = arith.constant dense<0.000000e+00> : vector<8x128xf32>
    %126 = tpu.matmul %123, %6, %cst_32 {dimension_numbers = #tpu.dot_dimension_numbers<[1], [0], [0], [1], [0, 0, 1, 1], [], []>} : vector<8x32xf32>, vector<32x128xf32>, vector<8x128xf32> -> vector<8x128xf32>
    %127 = arith.addf %125, %126 : vector<8x128xf32>
    %128 = arith.negf %127 : vector<8x128xf32>
    %129 = math.exp %128 : vector<8x128xf32>
    %cst_33 = arith.constant 1.000000e+00 : f32
    %130 = vector.broadcast %cst_33 : f32 to vector<8x128xf32>
    %131 = arith.addf %130, %129 : vector<8x128xf32>
    %132 = arith.divf %130, %131 : vector<8x128xf32>
    %133 = math.tanh %127 : vector<8x128xf32>
    %134 = vector.extract_strided_slice %132 {offsets = [0, 0], sizes = [8, 32], strides = [1, 1]} : vector<8x128xf32> to vector<8x32xf32>
    %135 = vector.extract_strided_slice %132 {offsets = [0, 32], sizes = [8, 32], strides = [1, 1]} : vector<8x128xf32> to vector<8x32xf32>
    %136 = vector.extract_strided_slice %133 {offsets = [0, 64], sizes = [8, 32], strides = [1, 1]} : vector<8x128xf32> to vector<8x32xf32>
    %137 = vector.extract_strided_slice %132 {offsets = [0, 96], sizes = [8, 32], strides = [1, 1]} : vector<8x128xf32> to vector<8x32xf32>
    %138 = arith.mulf %135, %121 : vector<8x32xf32>
    %139 = arith.mulf %134, %136 : vector<8x32xf32>
    %140 = arith.addf %138, %139 : vector<8x32xf32>
    %141 = math.tanh %140 : vector<8x32xf32>
    %142 = arith.mulf %137, %141 : vector<8x32xf32>
    %c48 = arith.constant 48 : index
    %c0_34 = arith.constant 0 : index
    %143 = vector.load %arg14[%c48, %c0_34] : memref<64x32xf32, #tpu.memory_space<vmem>>, vector<8x32xf32>
    tpu.vector_store %arg14[%c48, %c0_34], %142 {strides = array<i32>} : memref<64x32xf32, #tpu.memory_space<vmem>>, vector<8x32xf32>,
    %144 = vector.extract_strided_slice %5 {offsets = [56, 0], sizes = [8, 128], strides = [1, 1]} : vector<64x128xf32> to vector<8x128xf32>
    %cst_35 = arith.constant dense<0.000000e+00> : vector<8x128xf32>
    %145 = tpu.matmul %142, %6, %cst_35 {dimension_numbers = #tpu.dot_dimension_numbers<[1], [0], [0], [1], [0, 0, 1, 1], [], []>} : vector<8x32xf32>, vector<32x128xf32>, vector<8x128xf32> -> vector<8x128xf32>
    %146 = arith.addf %144, %145 : vector<8x128xf32>
    %147 = arith.negf %146 : vector<8x128xf32>
    %148 = math.exp %147 : vector<8x128xf32>
    %cst_36 = arith.constant 1.000000e+00 : f32
    %149 = vector.broadcast %cst_36 : f32 to vector<8x128xf32>
    %150 = arith.addf %149, %148 : vector<8x128xf32>
    %151 = arith.divf %149, %150 : vector<8x128xf32>
    %152 = math.tanh %146 : vector<8x128xf32>
    %153 = vector.extract_strided_slice %151 {offsets = [0, 0], sizes = [8, 32], strides = [1, 1]} : vector<8x128xf32> to vector<8x32xf32>
    %154 = vector.extract_strided_slice %151 {offsets = [0, 32], sizes = [8, 32], strides = [1, 1]} : vector<8x128xf32> to vector<8x32xf32>
    %155 = vector.extract_strided_slice %152 {offsets = [0, 64], sizes = [8, 32], strides = [1, 1]} : vector<8x128xf32> to vector<8x32xf32>
    %156 = vector.extract_strided_slice %151 {offsets = [0, 96], sizes = [8, 32], strides = [1, 1]} : vector<8x128xf32> to vector<8x32xf32>
    %157 = arith.mulf %154, %140 : vector<8x32xf32>
    %158 = arith.mulf %153, %155 : vector<8x32xf32>
    %159 = arith.addf %157, %158 : vector<8x32xf32>
    %160 = math.tanh %159 : vector<8x32xf32>
    %161 = arith.mulf %156, %160 : vector<8x32xf32>
    %c56 = arith.constant 56 : index
    %c0_37 = arith.constant 0 : index
    %162 = vector.load %arg14[%c56, %c0_37] : memref<64x32xf32, #tpu.memory_space<vmem>>, vector<8x32xf32>
    tpu.vector_store %arg14[%c56, %c0_37], %161 {strides = array<i32>} : memref<64x32xf32, #tpu.memory_space<vmem>>, vector<8x32xf32>,
    %c0_38 = arith.constant 0 : index
    %c0_39 = arith.constant 0 : index
    %163 = vector.load %arg14[%c0_38, %c0_39] : memref<64x32xf32, #tpu.memory_space<vmem>>, vector<64x32xf32>
    %c0_40 = arith.constant 0 : index
    %c0_41 = arith.constant 0 : index
    %164 = vector.load %arg6[%c0_40, %c0_41] : memref<32x128xf32, #tpu.memory_space<vmem>>, vector<32x128xf32>
    %cst_42 = arith.constant dense<0.000000e+00> : vector<64x128xf32>
    %165 = tpu.matmul %163, %164, %cst_42 {dimension_numbers = #tpu.dot_dimension_numbers<[1], [0], [0], [1], [0, 0, 1, 1], [], []>} : vector<64x32xf32>, vector<32x128xf32>, vector<64x128xf32> -> vector<64x128xf32>
    %c0_43 = arith.constant 0 : index
    %c0_44 = arith.constant 0 : index
    %166 = vector.load %arg8[%c0_43, %c0_44] : memref<1x128xf32, #tpu.memory_space<vmem>>, vector<1x128xf32>
    %167 = vector.broadcast %166 : vector<1x128xf32> to vector<64x128xf32>
    %168 = arith.addf %165, %167 : vector<64x128xf32>
    %c0_45 = arith.constant 0 : index
    %c0_46 = arith.constant 0 : index
    %169 = vector.load %arg7[%c0_45, %c0_46] : memref<32x128xf32, #tpu.memory_space<vmem>>, vector<32x128xf32>
    %c1 = arith.constant 1 : index
    %c0_47 = arith.constant 0 : index
    %c0_48 = arith.constant 0 : index
    %170 = vector.load %arg1[%c1, %c0_47, %c0_48] : memref<2x8x32xf32, #tpu.memory_space<vmem>>, vector<1x8x32xf32>
    %171 = vector.shape_cast %170 : vector<1x8x32xf32> to vector<8x32xf32>
    %c1_49 = arith.constant 1 : index
    %c0_50 = arith.constant 0 : index
    %c0_51 = arith.constant 0 : index
    %172 = vector.load %arg2[%c1_49, %c0_50, %c0_51] : memref<2x8x32xf32, #tpu.memory_space<vmem>>, vector<1x8x32xf32>
    %173 = vector.shape_cast %172 : vector<1x8x32xf32> to vector<8x32xf32>
    %174 = vector.extract_strided_slice %168 {offsets = [0, 0], sizes = [8, 128], strides = [1, 1]} : vector<64x128xf32> to vector<8x128xf32>
    %cst_52 = arith.constant dense<0.000000e+00> : vector<8x128xf32>
    %175 = tpu.matmul %171, %169, %cst_52 {dimension_numbers = #tpu.dot_dimension_numbers<[1], [0], [0], [1], [0, 0, 1, 1], [], []>} : vector<8x32xf32>, vector<32x128xf32>, vector<8x128xf32> -> vector<8x128xf32>
    %176 = arith.addf %174, %175 : vector<8x128xf32>
    %177 = arith.negf %176 : vector<8x128xf32>
    %178 = math.exp %177 : vector<8x128xf32>
    %cst_53 = arith.constant 1.000000e+00 : f32
    %179 = vector.broadcast %cst_53 : f32 to vector<8x128xf32>
    %180 = arith.addf %179, %178 : vector<8x128xf32>
    %181 = arith.divf %179, %180 : vector<8x128xf32>
    %182 = math.tanh %176 : vector<8x128xf32>
    %183 = vector.extract_strided_slice %181 {offsets = [0, 0], sizes = [8, 32], strides = [1, 1]} : vector<8x128xf32> to vector<8x32xf32>
    %184 = vector.extract_strided_slice %181 {offsets = [0, 32], sizes = [8, 32], strides = [1, 1]} : vector<8x128xf32> to vector<8x32xf32>
    %185 = vector.extract_strided_slice %182 {offsets = [0, 64], sizes = [8, 32], strides = [1, 1]} : vector<8x128xf32> to vector<8x32xf32>
    %186 = vector.extract_strided_slice %181 {offsets = [0, 96], sizes = [8, 32], strides = [1, 1]} : vector<8x128xf32> to vector<8x32xf32>
    %187 = arith.mulf %184, %173 : vector<8x32xf32>
    %188 = arith.mulf %183, %185 : vector<8x32xf32>
    %189 = arith.addf %187, %188 : vector<8x32xf32>
    %190 = math.tanh %189 : vector<8x32xf32>
    %191 = arith.mulf %186, %190 : vector<8x32xf32>
    %192 = vector.extract_strided_slice %168 {offsets = [8, 0], sizes = [8, 128], strides = [1, 1]} : vector<64x128xf32> to vector<8x128xf32>
    %cst_54 = arith.constant dense<0.000000e+00> : vector<8x128xf32>
    %193 = tpu.matmul %191, %169, %cst_54 {dimension_numbers = #tpu.dot_dimension_numbers<[1], [0], [0], [1], [0, 0, 1, 1], [], []>} : vector<8x32xf32>, vector<32x128xf32>, vector<8x128xf32> -> vector<8x128xf32>
    %194 = arith.addf %192, %193 : vector<8x128xf32>
    %195 = arith.negf %194 : vector<8x128xf32>
    %196 = math.exp %195 : vector<8x128xf32>
    %cst_55 = arith.constant 1.000000e+00 : f32
    %197 = vector.broadcast %cst_55 : f32 to vector<8x128xf32>
    %198 = arith.addf %197, %196 : vector<8x128xf32>
    %199 = arith.divf %197, %198 : vector<8x128xf32>
    %200 = math.tanh %194 : vector<8x128xf32>
    %201 = vector.extract_strided_slice %199 {offsets = [0, 0], sizes = [8, 32], strides = [1, 1]} : vector<8x128xf32> to vector<8x32xf32>
    %202 = vector.extract_strided_slice %199 {offsets = [0, 32], sizes = [8, 32], strides = [1, 1]} : vector<8x128xf32> to vector<8x32xf32>
    %203 = vector.extract_strided_slice %200 {offsets = [0, 64], sizes = [8, 32], strides = [1, 1]} : vector<8x128xf32> to vector<8x32xf32>
    %204 = vector.extract_strided_slice %199 {offsets = [0, 96], sizes = [8, 32], strides = [1, 1]} : vector<8x128xf32> to vector<8x32xf32>
    %205 = arith.mulf %202, %189 : vector<8x32xf32>
    %206 = arith.mulf %201, %203 : vector<8x32xf32>
    %207 = arith.addf %205, %206 : vector<8x32xf32>
    %208 = math.tanh %207 : vector<8x32xf32>
    %209 = arith.mulf %204, %208 : vector<8x32xf32>
    %210 = vector.extract_strided_slice %168 {offsets = [16, 0], sizes = [8, 128], strides = [1, 1]} : vector<64x128xf32> to vector<8x128xf32>
    %cst_56 = arith.constant dense<0.000000e+00> : vector<8x128xf32>
    %211 = tpu.matmul %209, %169, %cst_56 {dimension_numbers = #tpu.dot_dimension_numbers<[1], [0], [0], [1], [0, 0, 1, 1], [], []>} : vector<8x32xf32>, vector<32x128xf32>, vector<8x128xf32> -> vector<8x128xf32>
    %212 = arith.addf %210, %211 : vector<8x128xf32>
    %213 = arith.negf %212 : vector<8x128xf32>
    %214 = math.exp %213 : vector<8x128xf32>
    %cst_57 = arith.constant 1.000000e+00 : f32
    %215 = vector.broadcast %cst_57 : f32 to vector<8x128xf32>
    %216 = arith.addf %215, %214 : vector<8x128xf32>
    %217 = arith.divf %215, %216 : vector<8x128xf32>
    %218 = math.tanh %212 : vector<8x128xf32>
    %219 = vector.extract_strided_slice %217 {offsets = [0, 0], sizes = [8, 32], strides = [1, 1]} : vector<8x128xf32> to vector<8x32xf32>
    %220 = vector.extract_strided_slice %217 {offsets = [0, 32], sizes = [8, 32], strides = [1, 1]} : vector<8x128xf32> to vector<8x32xf32>
    %221 = vector.extract_strided_slice %218 {offsets = [0, 64], sizes = [8, 32], strides = [1, 1]} : vector<8x128xf32> to vector<8x32xf32>
    %222 = vector.extract_strided_slice %217 {offsets = [0, 96], sizes = [8, 32], strides = [1, 1]} : vector<8x128xf32> to vector<8x32xf32>
    %223 = arith.mulf %220, %207 : vector<8x32xf32>
    %224 = arith.mulf %219, %221 : vector<8x32xf32>
    %225 = arith.addf %223, %224 : vector<8x32xf32>
    %226 = math.tanh %225 : vector<8x32xf32>
    %227 = arith.mulf %222, %226 : vector<8x32xf32>
    %228 = vector.extract_strided_slice %168 {offsets = [24, 0], sizes = [8, 128], strides = [1, 1]} : vector<64x128xf32> to vector<8x128xf32>
    %cst_58 = arith.constant dense<0.000000e+00> : vector<8x128xf32>
    %229 = tpu.matmul %227, %169, %cst_58 {dimension_numbers = #tpu.dot_dimension_numbers<[1], [0], [0], [1], [0, 0, 1, 1], [], []>} : vector<8x32xf32>, vector<32x128xf32>, vector<8x128xf32> -> vector<8x128xf32>
    %230 = arith.addf %228, %229 : vector<8x128xf32>
    %231 = arith.negf %230 : vector<8x128xf32>
    %232 = math.exp %231 : vector<8x128xf32>
    %cst_59 = arith.constant 1.000000e+00 : f32
    %233 = vector.broadcast %cst_59 : f32 to vector<8x128xf32>
    %234 = arith.addf %233, %232 : vector<8x128xf32>
    %235 = arith.divf %233, %234 : vector<8x128xf32>
    %236 = math.tanh %230 : vector<8x128xf32>
    %237 = vector.extract_strided_slice %235 {offsets = [0, 0], sizes = [8, 32], strides = [1, 1]} : vector<8x128xf32> to vector<8x32xf32>
    %238 = vector.extract_strided_slice %235 {offsets = [0, 32], sizes = [8, 32], strides = [1, 1]} : vector<8x128xf32> to vector<8x32xf32>
    %239 = vector.extract_strided_slice %236 {offsets = [0, 64], sizes = [8, 32], strides = [1, 1]} : vector<8x128xf32> to vector<8x32xf32>
    %240 = vector.extract_strided_slice %235 {offsets = [0, 96], sizes = [8, 32], strides = [1, 1]} : vector<8x128xf32> to vector<8x32xf32>
    %241 = arith.mulf %238, %225 : vector<8x32xf32>
    %242 = arith.mulf %237, %239 : vector<8x32xf32>
    %243 = arith.addf %241, %242 : vector<8x32xf32>
    %244 = math.tanh %243 : vector<8x32xf32>
    %245 = arith.mulf %240, %244 : vector<8x32xf32>
    %246 = vector.extract_strided_slice %168 {offsets = [32, 0], sizes = [8, 128], strides = [1, 1]} : vector<64x128xf32> to vector<8x128xf32>
    %cst_60 = arith.constant dense<0.000000e+00> : vector<8x128xf32>
    %247 = tpu.matmul %245, %169, %cst_60 {dimension_numbers = #tpu.dot_dimension_numbers<[1], [0], [0], [1], [0, 0, 1, 1], [], []>} : vector<8x32xf32>, vector<32x128xf32>, vector<8x128xf32> -> vector<8x128xf32>
    %248 = arith.addf %246, %247 : vector<8x128xf32>
    %249 = arith.negf %248 : vector<8x128xf32>
    %250 = math.exp %249 : vector<8x128xf32>
    %cst_61 = arith.constant 1.000000e+00 : f32
    %251 = vector.broadcast %cst_61 : f32 to vector<8x128xf32>
    %252 = arith.addf %251, %250 : vector<8x128xf32>
    %253 = arith.divf %251, %252 : vector<8x128xf32>
    %254 = math.tanh %248 : vector<8x128xf32>
    %255 = vector.extract_strided_slice %253 {offsets = [0, 0], sizes = [8, 32], strides = [1, 1]} : vector<8x128xf32> to vector<8x32xf32>
    %256 = vector.extract_strided_slice %253 {offsets = [0, 32], sizes = [8, 32], strides = [1, 1]} : vector<8x128xf32> to vector<8x32xf32>
    %257 = vector.extract_strided_slice %254 {offsets = [0, 64], sizes = [8, 32], strides = [1, 1]} : vector<8x128xf32> to vector<8x32xf32>
    %258 = vector.extract_strided_slice %253 {offsets = [0, 96], sizes = [8, 32], strides = [1, 1]} : vector<8x128xf32> to vector<8x32xf32>
    %259 = arith.mulf %256, %243 : vector<8x32xf32>
    %260 = arith.mulf %255, %257 : vector<8x32xf32>
    %261 = arith.addf %259, %260 : vector<8x32xf32>
    %262 = math.tanh %261 : vector<8x32xf32>
    %263 = arith.mulf %258, %262 : vector<8x32xf32>
    %264 = vector.extract_strided_slice %168 {offsets = [40, 0], sizes = [8, 128], strides = [1, 1]} : vector<64x128xf32> to vector<8x128xf32>
    %cst_62 = arith.constant dense<0.000000e+00> : vector<8x128xf32>
    %265 = tpu.matmul %263, %169, %cst_62 {dimension_numbers = #tpu.dot_dimension_numbers<[1], [0], [0], [1], [0, 0, 1, 1], [], []>} : vector<8x32xf32>, vector<32x128xf32>, vector<8x128xf32> -> vector<8x128xf32>
    %266 = arith.addf %264, %265 : vector<8x128xf32>
    %267 = arith.negf %266 : vector<8x128xf32>
    %268 = math.exp %267 : vector<8x128xf32>
    %cst_63 = arith.constant 1.000000e+00 : f32
    %269 = vector.broadcast %cst_63 : f32 to vector<8x128xf32>
    %270 = arith.addf %269, %268 : vector<8x128xf32>
    %271 = arith.divf %269, %270 : vector<8x128xf32>
    %272 = math.tanh %266 : vector<8x128xf32>
    %273 = vector.extract_strided_slice %271 {offsets = [0, 0], sizes = [8, 32], strides = [1, 1]} : vector<8x128xf32> to vector<8x32xf32>
    %274 = vector.extract_strided_slice %271 {offsets = [0, 32], sizes = [8, 32], strides = [1, 1]} : vector<8x128xf32> to vector<8x32xf32>
    %275 = vector.extract_strided_slice %272 {offsets = [0, 64], sizes = [8, 32], strides = [1, 1]} : vector<8x128xf32> to vector<8x32xf32>
    %276 = vector.extract_strided_slice %271 {offsets = [0, 96], sizes = [8, 32], strides = [1, 1]} : vector<8x128xf32> to vector<8x32xf32>
    %277 = arith.mulf %274, %261 : vector<8x32xf32>
    %278 = arith.mulf %273, %275 : vector<8x32xf32>
    %279 = arith.addf %277, %278 : vector<8x32xf32>
    %280 = math.tanh %279 : vector<8x32xf32>
    %281 = arith.mulf %276, %280 : vector<8x32xf32>
    %282 = vector.extract_strided_slice %168 {offsets = [48, 0], sizes = [8, 128], strides = [1, 1]} : vector<64x128xf32> to vector<8x128xf32>
    %cst_64 = arith.constant dense<0.000000e+00> : vector<8x128xf32>
    %283 = tpu.matmul %281, %169, %cst_64 {dimension_numbers = #tpu.dot_dimension_numbers<[1], [0], [0], [1], [0, 0, 1, 1], [], []>} : vector<8x32xf32>, vector<32x128xf32>, vector<8x128xf32> -> vector<8x128xf32>
    %284 = arith.addf %282, %283 : vector<8x128xf32>
    %285 = arith.negf %284 : vector<8x128xf32>
    %286 = math.exp %285 : vector<8x128xf32>
    %cst_65 = arith.constant 1.000000e+00 : f32
    %287 = vector.broadcast %cst_65 : f32 to vector<8x128xf32>
    %288 = arith.addf %287, %286 : vector<8x128xf32>
    %289 = arith.divf %287, %288 : vector<8x128xf32>
    %290 = math.tanh %284 : vector<8x128xf32>
    %291 = vector.extract_strided_slice %289 {offsets = [0, 0], sizes = [8, 32], strides = [1, 1]} : vector<8x128xf32> to vector<8x32xf32>
    %292 = vector.extract_strided_slice %289 {offsets = [0, 32], sizes = [8, 32], strides = [1, 1]} : vector<8x128xf32> to vector<8x32xf32>
    %293 = vector.extract_strided_slice %290 {offsets = [0, 64], sizes = [8, 32], strides = [1, 1]} : vector<8x128xf32> to vector<8x32xf32>
    %294 = vector.extract_strided_slice %289 {offsets = [0, 96], sizes = [8, 32], strides = [1, 1]} : vector<8x128xf32> to vector<8x32xf32>
    %295 = arith.mulf %292, %279 : vector<8x32xf32>
    %296 = arith.mulf %291, %293 : vector<8x32xf32>
    %297 = arith.addf %295, %296 : vector<8x32xf32>
    %298 = math.tanh %297 : vector<8x32xf32>
    %299 = arith.mulf %294, %298 : vector<8x32xf32>
    %300 = vector.extract_strided_slice %168 {offsets = [56, 0], sizes = [8, 128], strides = [1, 1]} : vector<64x128xf32> to vector<8x128xf32>
    %cst_66 = arith.constant dense<0.000000e+00> : vector<8x128xf32>
    %301 = tpu.matmul %299, %169, %cst_66 {dimension_numbers = #tpu.dot_dimension_numbers<[1], [0], [0], [1], [0, 0, 1, 1], [], []>} : vector<8x32xf32>, vector<32x128xf32>, vector<8x128xf32> -> vector<8x128xf32>
    %302 = arith.addf %300, %301 : vector<8x128xf32>
    %303 = arith.negf %302 : vector<8x128xf32>
    %304 = math.exp %303 : vector<8x128xf32>
    %cst_67 = arith.constant 1.000000e+00 : f32
    %305 = vector.broadcast %cst_67 : f32 to vector<8x128xf32>
    %306 = arith.addf %305, %304 : vector<8x128xf32>
    %307 = arith.divf %305, %306 : vector<8x128xf32>
    %308 = math.tanh %302 : vector<8x128xf32>
    %309 = vector.extract_strided_slice %307 {offsets = [0, 0], sizes = [8, 32], strides = [1, 1]} : vector<8x128xf32> to vector<8x32xf32>
    %310 = vector.extract_strided_slice %307 {offsets = [0, 32], sizes = [8, 32], strides = [1, 1]} : vector<8x128xf32> to vector<8x32xf32>
    %311 = vector.extract_strided_slice %308 {offsets = [0, 64], sizes = [8, 32], strides = [1, 1]} : vector<8x128xf32> to vector<8x32xf32>
    %312 = vector.extract_strided_slice %307 {offsets = [0, 96], sizes = [8, 32], strides = [1, 1]} : vector<8x128xf32> to vector<8x32xf32>
    %313 = arith.mulf %310, %297 : vector<8x32xf32>
    %314 = arith.mulf %309, %311 : vector<8x32xf32>
    %315 = arith.addf %313, %314 : vector<8x32xf32>
    %316 = math.tanh %315 : vector<8x32xf32>
    %317 = arith.mulf %312, %316 : vector<8x32xf32>
    %c0_68 = arith.constant 0 : index
    %c0_69 = arith.constant 0 : index
    %318 = vector.load %arg9[%c0_68, %c0_69] : memref<32x16xf32, #tpu.memory_space<vmem>>, vector<32x16xf32>
    %cst_70 = arith.constant dense<0.000000e+00> : vector<8x16xf32>
    %319 = tpu.matmul %317, %318, %cst_70 {dimension_numbers = #tpu.dot_dimension_numbers<[1], [0], [0], [1], [0, 0, 1, 1], [], []>} : vector<8x32xf32>, vector<32x16xf32>, vector<8x16xf32> -> vector<8x16xf32>
    %c0_71 = arith.constant 0 : index
    %c0_72 = arith.constant 0 : index
    %320 = vector.load %arg10[%c0_71, %c0_72] : memref<1x16xf32, #tpu.memory_space<vmem>>, vector<1x16xf32>
    %321 = vector.broadcast %320 : vector<1x16xf32> to vector<8x16xf32>
    %322 = arith.addf %319, %321 : vector<8x16xf32>
    %c0_73 = arith.constant 0 : index
    %c0_74 = arith.constant 0 : index
    %323 = vector.load %arg11[%c0_73, %c0_74] : memref<8x16xf32, #tpu.memory_space<vmem>>, vector<8x16xf32>
    tpu.vector_store %arg11[%c0_73, %c0_74], %322 {strides = array<i32>} : memref<8x16xf32, #tpu.memory_space<vmem>>, vector<8x16xf32>,
    %c0_75 = arith.constant 0 : index
    %c0_76 = arith.constant 0 : index
    %c0_77 = arith.constant 0 : index
    %324 = vector.load %arg12[%c0_75, %c0_76, %c0_77] : memref<2x8x32xf32, #tpu.memory_space<vmem>>, vector<1x8x32xf32>
    %325 = vector.shape_cast %324 : vector<1x8x32xf32> to vector<8x32xf32>
    %326 = vector.shape_cast %161 : vector<8x32xf32> to vector<1x8x32xf32>
    tpu.vector_store %arg12[%c0_75, %c0_76, %c0_77], %326 {strides = array<i32>} : memref<2x8x32xf32, #tpu.memory_space<vmem>>, vector<1x8x32xf32>,
    %c1_78 = arith.constant 1 : index
    %c0_79 = arith.constant 0 : index
    %c0_80 = arith.constant 0 : index
    %327 = vector.load %arg12[%c1_78, %c0_79, %c0_80] : memref<2x8x32xf32, #tpu.memory_space<vmem>>, vector<1x8x32xf32>
    %328 = vector.shape_cast %327 : vector<1x8x32xf32> to vector<8x32xf32>
    %329 = vector.shape_cast %317 : vector<8x32xf32> to vector<1x8x32xf32>
    tpu.vector_store %arg12[%c1_78, %c0_79, %c0_80], %329 {strides = array<i32>} : memref<2x8x32xf32, #tpu.memory_space<vmem>>, vector<1x8x32xf32>,
    %c0_81 = arith.constant 0 : index
    %c0_82 = arith.constant 0 : index
    %c0_83 = arith.constant 0 : index
    %330 = vector.load %arg13[%c0_81, %c0_82, %c0_83] : memref<2x8x32xf32, #tpu.memory_space<vmem>>, vector<1x8x32xf32>
    %331 = vector.shape_cast %330 : vector<1x8x32xf32> to vector<8x32xf32>
    %332 = vector.shape_cast %159 : vector<8x32xf32> to vector<1x8x32xf32>
    tpu.vector_store %arg13[%c0_81, %c0_82, %c0_83], %332 {strides = array<i32>} : memref<2x8x32xf32, #tpu.memory_space<vmem>>, vector<1x8x32xf32>,
    %c1_84 = arith.constant 1 : index
    %c0_85 = arith.constant 0 : index
    %c0_86 = arith.constant 0 : index
    %333 = vector.load %arg13[%c1_84, %c0_85, %c0_86] : memref<2x8x32xf32, #tpu.memory_space<vmem>>, vector<1x8x32xf32>
    %334 = vector.shape_cast %333 : vector<1x8x32xf32> to vector<8x32xf32>
    %335 = vector.shape_cast %315 : vector<8x32xf32> to vector<1x8x32xf32>
    tpu.vector_store %arg13[%c1_84, %c0_85, %c0_86], %335 {strides = array<i32>} : memref<2x8x32xf32, #tpu.memory_space<vmem>>, vector<1x8x32xf32>,
    return
  }
}

</mosaic_0001>

<llo_original>
// kernel: tpu_custom_call.1
$region0: #{tpu_custom_call.1}
  #allocation0 [shape = 'u32[]', space=smem, size = 0x4, offset = 0x4, fixed_abs, tag = 'smem constant byte address 0x4 - core index']
  #allocation1 [shape = 'u32[144,128]{1,0:T(1,128)}', space=vmem, size = 0x12000, scoped, tag = 'internal scratch']
  #allocation2 [shape = 'f32[64,32]{1,0:T(8,128)}', space=vmem, size = 0x8000, scoped, tag = 'scratch operand']
  %s0 = inlined_call_operand.vmem [shape: f32[64,16], index: 0, kind: input, shape index: {}]
  %s1 = inlined_call_operand.vmem [shape: f32[2,8,32], index: 1, kind: input, shape index: {}]
  %s2 = inlined_call_operand.hbm [shape: f32[2,8,32], index: 2, kind: input, shape index: {}]
  %s3 = inlined_call_operand.hbm [shape: f32[16,128], index: 3, kind: input, shape index: {}]
  %s4 = inlined_call_operand.vmem [shape: f32[32,128], index: 4, kind: input, shape index: {}]
  %s5 = inlined_call_operand.vmem [shape: f32[1,128], index: 5, kind: input, shape index: {}]
  %s6 = inlined_call_operand.vmem [shape: f32[32,128], index: 6, kind: input, shape index: {}]
  %s7 = inlined_call_operand.vmem [shape: f32[32,128], index: 7, kind: input, shape index: {}]
  %s8 = inlined_call_operand.vmem [shape: f32[1,128], index: 8, kind: input, shape index: {}]
  %s9 = inlined_call_operand.vmem [shape: f32[32,16], index: 9, kind: input, shape index: {}]
  %s10 = inlined_call_operand.vmem [shape: f32[1,16], index: 10, kind: input, shape index: {}]
  %s11 = inlined_call_operand.hbm [shape: f32[8,16], index: 11, kind: output, shape index: {0}]
  %s12 = inlined_call_operand.hbm [shape: f32[2,8,32], index: 12, kind: output, shape index: {1}]
  %s13 = inlined_call_operand.hbm [shape: f32[2,8,32], index: 13, kind: output, shape index: {2}]
  %14 = xla_tuple %s11, %s12, %s13
  %s15 = sld [smem:[#allocation0]]
  $region78: #{tpu_custom_call.1} parent=0
    _
  %s17 = ssub.s32 1, %s15
  %s18 = scalar_select 0, %s17, %s15
  $region1: #{tpu_custom_call.1} parent=0
    #allocation3 [shape = 'u8[8192]{0}', space=vmem, size = 0x2000, scoped, tag = 'input window, operand 2, single buffered']
    #allocation4 [shape = 's32[1]{0}', space=sflag, size = 0x4, scoped, tag = 'scoped memory for tpu_custom_call.1']
    #allocation5 [shape = 's32[1]{0}', space=sflag, size = 0x4, scoped, tag = 'scoped memory for tpu_custom_call.1']
    #allocation6 [shape = 'u8[8192]{0}', space=vmem, size = 0x2000, scoped, tag = 'input window, operand 3, single buffered']
    #allocation7 [shape = 's32[1]{0}', space=sflag, size = 0x4, scoped, tag = 'scoped memory for tpu_custom_call.1']
    #allocation8 [shape = 'u8[4096]{0}', space=vmem, size = 0x1000, scoped, tag = 'output window, operand 0, single buffered']
    #allocation9 [shape = 'u8[8192]{0}', space=vmem, size = 0x2000, scoped, tag = 'output window, operand 1, single buffered']
    #allocation10 [shape = 's32[1]{0}', space=sflag, size = 0x4, scoped, tag = 'scoped memory for tpu_custom_call.1']
    #allocation11 [shape = 'u8[8192]{0}', space=vmem, size = 0x2000, scoped, tag = 'output window, operand 2, single buffered']
    %19 = vsyncpa [#allocation4], 0
    %20 = vsyncpa [#allocation7], 0
    %21 = vsyncpa [#allocation5], 0
    %22 = vsyncpa [#allocation10], 0
    // Predicated region
    $region2: #{tpu_custom_call.1} parent=1 // pred_check
      _
    $region3: #{tpu_custom_call.1} parent=1 // pred_check_branch
      %24 = sbr.rel (0) target = $region5
    $region4: #{tpu_custom_call.1} parent=1 // pred_region
      _
    $region5: #{tpu_custom_call.1} parent=1 // pred_fallthru
      _
    // Predicated region
    $region6: #{tpu_custom_call.1} parent=1 // pred_check
      _
    $region7: #{tpu_custom_call.1} parent=1 // pred_check_branch
      %26 = sbr.rel (0) target = $region9
    $region8: #{tpu_custom_call.1} parent=1 // pred_region
      _
    $region9: #{tpu_custom_call.1} parent=1 // pred_fallthru
      _
    // Predicated region
    $region10: #{tpu_custom_call.1} parent=1 // pred_check
      _
    $region11: #{tpu_custom_call.1} parent=1 // pred_check_branch
      %28 = sbr.rel (0) target = $region13
    $region12: #{tpu_custom_call.1} parent=1 // pred_region
      %s30 = ssub.s32 256, 256
      %31 = vsyncadd [#allocation4], %s30
      %s32 = sshll.u32 [#allocation3], 4
      %s33 = int_to_ptr.vmem [resolvable:$true] %s32
      %38 = dma.hbm_to_vmem [thread:$0]  %s2, 256, %s33, [#allocation4], 128, 128, 8
    $region13: #{tpu_custom_call.1} parent=1 // pred_fallthru
      _
    // Predicated region
    $region14: #{tpu_custom_call.1} parent=1 // pred_check
      _
    $region15: #{tpu_custom_call.1} parent=1 // pred_check_branch
      %40 = sbr.rel (0) target = $region17
    $region16: #{tpu_custom_call.1} parent=1 // pred_region
      %s42 = ssub.s32 256, 256
      %43 = vsyncadd [#allocation7], %s42
      %s44 = sshll.u32 [#allocation6], 4
      %s45 = int_to_ptr.vmem [resolvable:$true] %s44
      %50 = dma.hbm_to_vmem [thread:$0]  %s3, 256, %s45, [#allocation7], 128, 128, 8
    $region17: #{tpu_custom_call.1} parent=1 // pred_fallthru
      _
    // Predicated region
    $region18: #{tpu_custom_call.1} parent=1 // pred_check
      _
    $region19: #{tpu_custom_call.1} parent=1 // pred_check_branch
      %52 = sbr.rel (0) target = $region21
    $region20: #{tpu_custom_call.1} parent=1 // pred_region
      _
    $region21: #{tpu_custom_call.1} parent=1 // pred_fallthru
      _
    // Predicated region
    $region22: #{tpu_custom_call.1} parent=1 // pred_check
      _
    $region23: #{tpu_custom_call.1} parent=1 // pred_check_branch
      %54 = sbr.rel (0) target = $region25
    $region24: #{tpu_custom_call.1} parent=1 // pred_region
      _
    $region25: #{tpu_custom_call.1} parent=1 // pred_fallthru
      _
    // Predicated region
    $region26: #{tpu_custom_call.1} parent=1 // pred_check
      _
    $region27: #{tpu_custom_call.1} parent=1 // pred_check_branch
      %56 = sbr.rel (0) target = $region29
    $region28: #{tpu_custom_call.1} parent=1 // pred_region
      _
    $region29: #{tpu_custom_call.1} parent=1 // pred_fallthru
      _
    // Predicated region
    $region30: #{tpu_custom_call.1} parent=1 // pred_check
      _
    $region31: #{tpu_custom_call.1} parent=1 // pred_check_branch
      %58 = sbr.rel (0) target = $region33
    $region32: #{tpu_custom_call.1} parent=1 // pred_region
      _
    $region33: #{tpu_custom_call.1} parent=1 // pred_fallthru
      _
    // Predicated region
    $region34: #{tpu_custom_call.1} parent=1 // pred_check
      _
    $region35: #{tpu_custom_call.1} parent=1 // pred_check_branch
      %60 = sbr.rel (0) target = $region37
    $region36: #{tpu_custom_call.1} parent=1 // pred_region
      _
    $region37: #{tpu_custom_call.1} parent=1 // pred_fallthru
      _
    // Predicated region
    $region38: #{tpu_custom_call.1} parent=1 // pred_check
      _
    $region39: #{tpu_custom_call.1} parent=1 // pred_check_branch
      %62 = sbr.rel (0) target = $region41
    $region40: #{tpu_custom_call.1} parent=1 // pred_region
      _
    $region41: #{tpu_custom_call.1} parent=1 // pred_fallthru
      _
    // Predicated region
    $region42: #{tpu_custom_call.1} parent=1 // pred_check
      _
    $region43: #{tpu_custom_call.1} parent=1 // pred_check_branch
      %64 = sbr.rel (0) target = $region45
    $region44: #{tpu_custom_call.1} parent=1 // pred_region
      _
    $region45: #{tpu_custom_call.1} parent=1 // pred_fallthru
      _
    // Predicated region
    $region46: #{tpu_custom_call.1} parent=1 // pred_check
      _
    $region47: #{tpu_custom_call.1} parent=1 // pred_check_branch
      %66 = sbr.rel (0) target = $region49
    $region48: #{tpu_custom_call.1} parent=1 // pred_region
      %67 = dma.done [#allocation4], 256
    $region49: #{tpu_custom_call.1} parent=1 // pred_fallthru
      _
    // Predicated region
    $region50: #{tpu_custom_call.1} parent=1 // pred_check
      _
    $region51: #{tpu_custom_call.1} parent=1 // pred_check_branch
      %69 = sbr.rel (0) target = $region53
    $region52: #{tpu_custom_call.1} parent=1 // pred_region
      %70 = dma.done [#allocation7], 256
    $region53: #{tpu_custom_call.1} parent=1 // pred_fallthru
      _
    %v71 = vld [vmem:[%s0] sm:$0xff]
    %v72 = vld [vmem:[%s0 + $0x8] sm:$0xff]
    %v73 = vld [vmem:[%s0 + $0x10] sm:$0xff]
    %v74 = vld [vmem:[%s0 + $0x18] sm:$0xff]
    %v75 = vld [vmem:[%s0 + $0x20] sm:$0xff]
    %v76 = vld [vmem:[%s0 + $0x28] sm:$0xff]
    %v77 = vld [vmem:[%s0 + $0x30] sm:$0xff]
    %v78 = vld [vmem:[%s0 + $0x38] sm:$0xff]
    %v79 = vld [vmem:[#allocation6] sm:$0xff]
    %v80 = vld [vmem:[#allocation6 + $0x8] sm:$0xff]
    %v81 = vld [vmem:[%s5] sm:$0x1]
    %v83 = vlaneseq
    %v84 = vshrl.u32 %v83, 7
    %v85 = vsub.s32 0, %v84
    %v86 = vrot.slane %v81, %v85
    %vm88 = vcmask 130048
    %v90 = vsel %vm88, %v71, 0
    %v93 = vsel %vm88, %v72, 0
    %v96 = vsel %vm88, %v73, 0
    %v99 = vsel %vm88, %v74, 0
    %v102 = vsel %vm88, %v75, 0
    %v105 = vsel %vm88, %v76, 0
    %v108 = vsel %vm88, %v77, 0
    %v111 = vsel %vm88, %v78, 0
    %113 = vmatprep.subr.mxu0 0.0
    %114 = vmatpush1.msra.mxu0 %v79
    %115 = vmatprep.subr.mxu0 0.0
    %116 = vmatpush1.msra.mxu0 %v80
    %117 = vmatprep.subr.mxu0 0.0
    %118 = vmatpush1.msra.mxu0 0.0
    %119 = vmatprep.subr.mxu0 0.0
    %120 = vmatpush1.msra.mxu0 0.0
    %121 = vmatprep.subr.mxu0 0.0
    %122 = vmatpush1.msra.mxu0 0.0
    %123 = vmatprep.subr.mxu0 0.0
    %124 = vmatpush1.msra.mxu0 0.0
    %125 = vmatprep.subr.mxu0 0.0
    %126 = vmatpush1.msra.mxu0 0.0
    %127 = vmatprep.subr.mxu0 0.0
    %128 = vmatpush1.msra.mxu0 0.0
    %129 = vmatprep.subr.mxu0 0.0
    %130 = vmatpush1.msra.mxu0 0.0
    %131 = vmatprep.subr.mxu0 0.0
    %132 = vmatpush1.msra.mxu0 0.0
    %133 = vmatprep.subr.mxu0 0.0
    %134 = vmatpush1.msra.mxu0 0.0
    %135 = vmatprep.subr.mxu0 0.0
    %136 = vmatpush1.msra.mxu0 0.0
    %137 = vmatprep.subr.mxu0 0.0
    %138 = vmatpush1.msra.mxu0 0.0
    %139 = vmatprep.subr.mxu0 0.0
    %140 = vmatpush1.msra.mxu0 0.0
    %141 = vmatprep.subr.mxu0 0.0
    %142 = vmatpush1.msra.mxu0 0.0
    %143 = vmatprep.subr.mxu0 0.0
    %144 = vmatpush1.msra.mxu0 0.0
    %145 = vmatprep.subr.mxu0 0.0
    %146 = vmatpush1.msra.mxu0 0.0
    %147 = vmatprep.subr.mxu0 0.0
    %148 = vmatpush1.msra.mxu0 0.0
    %149 = vmatprep.subr.mxu0 0.0
    %150 = vmatpush1.msra.mxu0 0.0
    %151 = vmatprep.subr.mxu0 0.0
    %152 = vmatpush1.msra.mxu0 0.0
    %153 = vmatprep.subr.mxu0 0.0
    %154 = vmatpush1.msra.mxu0 0.0
    %155 = vmatprep.subr.mxu0 0.0
    %156 = vmatpush1.msra.mxu0 0.0
    %157 = vmatprep.subr.mxu0 0.0
    %158 = vmatpush1.msra.mxu0 0.0
    %159 = vmatprep.subr.mxu0 0.0
    %160 = vmatpush1.msra.mxu0 0.0
    %161 = vmatprep.subr.mxu0 0.0
    %162 = vmatpush1.msra.mxu0 0.0
    %163 = vmatprep.subr.mxu0 0.0
    %164 = vmatpush1.msra.mxu0 0.0
    %165 = vmatprep.subr.mxu0 0.0
    %166 = vmatpush1.msra.mxu0 0.0
    %167 = vmatprep.subr.mxu0 0.0
    %168 = vmatpush1.msra.mxu0 0.0
    %169 = vmatprep.subr.mxu0 0.0
    %170 = vmatpush1.msra.mxu0 0.0
    %171 = vmatprep.subr.mxu0 0.0
    %172 = vmatpush1.msra.mxu0 0.0
    %173 = vmatprep.subr.mxu0 0.0
    %174 = vmatpush1.msra.mxu0 0.0
    %175 = vmatprep.subr.mxu0 0.0
    %176 = vmatpush1.msra.mxu0 0.0
    %177 = vmatprep.mubr.f32.mxu0 0.0
    %178 = vmatmul.mubr.f32.gmra.mrb[0].mxu0 %v90
    %v179 = vpop.f32.mrb[0].mxu0
    %v180 = vadd.f32 %v86, %v179
    %v181 = vpop.f32.mrb[0].mxu0
    %182 = vmatprep.mubr.f32.mxu0 0.0
    %183 = vmatmul.mubr.f32.gmra.mrb[0].mxu0 %v93
    %v184 = vpop.f32.mrb[0].mxu0
    %v185 = vadd.f32 %v86, %v184
    %v186 = vpop.f32.mrb[0].mxu0
    %187 = vmatprep.mubr.f32.mxu0 0.0
    %188 = vmatmul.mubr.f32.gmra.mrb[0].mxu0 %v96
    %v189 = vpop.f32.mrb[0].mxu0
    %v190 = vadd.f32 %v86, %v189
    %v191 = vpop.f32.mrb[0].mxu0
    %192 = vmatprep.mubr.f32.mxu0 0.0
    %193 = vmatmul.mubr.f32.gmra.mrb[0].mxu0 %v99
    %v194 = vpop.f32.mrb[0].mxu0
    %v195 = vadd.f32 %v86, %v194
    %v196 = vpop.f32.mrb[0].mxu0
    %197 = vmatprep.mubr.f32.mxu0 0.0
    %198 = vmatmul.mubr.f32.gmra.mrb[0].mxu0 %v102
    %v199 = vpop.f32.mrb[0].mxu0
    %v200 = vadd.f32 %v86, %v199
    %v201 = vpop.f32.mrb[0].mxu0
    %202 = vmatprep.mubr.f32.mxu0 0.0
    %203 = vmatmul.mubr.f32.gmra.mrb[0].mxu0 %v105
    %v204 = vpop.f32.mrb[0].mxu0
    %v205 = vadd.f32 %v86, %v204
    %v206 = vpop.f32.mrb[0].mxu0
    %207 = vmatprep.mubr.f32.mxu0 0.0
    %208 = vmatmul.mubr.f32.gmra.mrb[0].mxu0 %v108
    %v209 = vpop.f32.mrb[0].mxu0
    %v210 = vadd.f32 %v86, %v209
    %v211 = vpop.f32.mrb[0].mxu0
    %212 = vmatprep.mubr.f32.mxu0 0.0
    %213 = vmatmul.mubr.f32.gmra.mrb[0].mxu0 %v111
    %v214 = vpop.f32.mrb[0].mxu0
    %v215 = vadd.f32 %v86, %v214
    %v216 = vpop.f32.mrb[0].mxu0
    %217 = vdwg.mxu0
    %v218 = vld [vmem:[%s4] sm:$0xff]
    %v219 = vld [vmem:[%s4 + $0x8] sm:$0xff]
    %v220 = vld [vmem:[%s4 + $0x10] sm:$0xff]
    %v221 = vld [vmem:[%s4 + $0x18] sm:$0xff]
    %v222 = vld [vmem:[%s1] sm:$0xff]
    %v223 = vld [vmem:[#allocation3] sm:$0xff]
    %vm224 = vcmask 261120
    %v226 = vsel %vm224, %v222, 0
    %228 = vmatprep.subr.mxu0 0.0
    %229 = vmatpush1.msra.mxu0 %v218
    %230 = vmatprep.subr.mxu0 0.0
    %231 = vmatpush1.msra.mxu0 %v219
    %232 = vmatprep.subr.mxu0 0.0
    %233 = vmatpush1.msra.mxu0 %v220
    %234 = vmatprep.subr.mxu0 0.0
    %235 = vmatpush1.msra.mxu0 %v221
    %236 = vmatprep.subr.mxu0 0.0
    %237 = vmatpush1.msra.mxu0 0.0
    %238 = vmatprep.subr.mxu0 0.0
    %239 = vmatpush1.msra.mxu0 0.0
    %240 = vmatprep.subr.mxu0 0.0
    %241 = vmatpush1.msra.mxu0 0.0
    %242 = vmatprep.subr.mxu0 0.0
    %243 = vmatpush1.msra.mxu0 0.0
    %244 = vmatprep.subr.mxu0 0.0
    %245 = vmatpush1.msra.mxu0 0.0
    %246 = vmatprep.subr.mxu0 0.0
    %247 = vmatpush1.msra.mxu0 0.0
    %248 = vmatprep.subr.mxu0 0.0
    %249 = vmatpush1.msra.mxu0 0.0
    %250 = vmatprep.subr.mxu0 0.0
    %251 = vmatpush1.msra.mxu0 0.0
    %252 = vmatprep.subr.mxu0 0.0
    %253 = vmatpush1.msra.mxu0 0.0
    %254 = vmatprep.subr.mxu0 0.0
    %255 = vmatpush1.msra.mxu0 0.0
    %256 = vmatprep.subr.mxu0 0.0
    %257 = vmatpush1.msra.mxu0 0.0
    %258 = vmatprep.subr.mxu0 0.0
    %259 = vmatpush1.msra.mxu0 0.0
    %260 = vmatprep.subr.mxu0 0.0
    %261 = vmatpush1.msra.mxu0 0.0
    %262 = vmatprep.subr.mxu0 0.0
    %263 = vmatpush1.msra.mxu0 0.0
    %264 = vmatprep.subr.mxu0 0.0
    %265 = vmatpush1.msra.mxu0 0.0
    %266 = vmatprep.subr.mxu0 0.0
    %267 = vmatpush1.msra.mxu0 0.0
    %268 = vmatprep.subr.mxu0 0.0
    %269 = vmatpush1.msra.mxu0 0.0
    %270 = vmatprep.subr.mxu0 0.0
    %271 = vmatpush1.msra.mxu0 0.0
    %272 = vmatprep.subr.mxu0 0.0
    %273 = vmatpush1.msra.mxu0 0.0
    %274 = vmatprep.subr.mxu0 0.0
    %275 = vmatpush1.msra.mxu0 0.0
    %276 = vmatprep.subr.mxu0 0.0
    %277 = vmatpush1.msra.mxu0 0.0
    %278 = vmatprep.subr.mxu0 0.0
    %279 = vmatpush1.msra.mxu0 0.0
    %280 = vmatprep.subr.mxu0 0.0
    %281 = vmatpush1.msra.mxu0 0.0
    %282 = vmatprep.subr.mxu0 0.0
    %283 = vmatpush1.msra.mxu0 0.0
    %284 = vmatprep.subr.mxu0 0.0
    %285 = vmatpush1.msra.mxu0 0.0
    %286 = vmatprep.subr.mxu0 0.0
    %287 = vmatpush1.msra.mxu0 0.0
    %288 = vmatprep.subr.mxu0 0.0
    %289 = vmatpush1.msra.mxu0 0.0
    %290 = vmatprep.subr.mxu0 0.0
    %291 = vmatpush1.msra.mxu0 0.0
    %292 = vmatprep.mubr.f32.mxu0 0.0
    %293 = vmatmul.mubr.f32.gmra.mrb[0].mxu0 %v226
    %v294 = vpop.f32.mrb[0].mxu0
    %v295 = vadd.f32 0.0, %v294
    %v296 = vpop.f32.mrb[0].mxu0
    %297 = vdwg.mxu0
    %v298 = vadd.f32 %v180, %v295
    %v299 = vxor.u32 %v298, 2147483648
    %v300 = vmul.f32 %v299, 1.442695
    %v301 = vpow.pop %v300
    %v302 = vadd.f32 %v301, 1.0
    %v303 = vrcp.pop %v302
    %v304 = vmul.f32 1.0, %v303
    %v305 = vtanh.pop %v298
    %307 = vrot.lane.b32.xlu0 %v223, 32
    %v308 = vpop.permute.xlu0 %307
    %v310 = vmul.f32 %v304, %v308
    %312 = vrot.lane.b32.xlu0 %v305, 64
    %v313 = vpop.permute.xlu0 %312
    %v315 = vmul.f32 %v304, %v313
    %317 = vrot.lane.b32.xlu0 %v315, 32
    %v318 = vpop.permute.xlu0 %317
    %v320 = vadd.f32 %v310, %v318
    %v321 = vtanh.pop %v320
    %323 = vrot.lane.b32.xlu0 %v321, 64
    %v324 = vpop.permute.xlu0 %323
    %v326 = vmul.f32 %v304, %v324
    %328 = vrot.lane.b32.xlu0 %v326, 32
    %v329 = vpop.permute.xlu0 %328
    %331 = vst.msk [vmem:[#allocation2] sm:$0xff] %vm224, %v329
    %v332 = vsel %vm224, %v329, 0
    %334 = vmatprep.subr.mxu0 0.0
    %335 = vmatpush1.msra.mxu0 %v218
    %336 = vmatprep.subr.mxu0 0.0
    %337 = vmatpush1.msra.mxu0 %v219
    %338 = vmatprep.subr.mxu0 0.0
    %339 = vmatpush1.msra.mxu0 %v220
    %340 = vmatprep.subr.mxu0 0.0
    %341 = vmatpush1.msra.mxu0 %v221
    %342 = vmatprep.subr.mxu0 0.0
    %343 = vmatpush1.msra.mxu0 0.0
    %344 = vmatprep.subr.mxu0 0.0
    %345 = vmatpush1.msra.mxu0 0.0
    %346 = vmatprep.subr.mxu0 0.0
    %347 = vmatpush1.msra.mxu0 0.0
    %348 = vmatprep.subr.mxu0 0.0
    %349 = vmatpush1.msra.mxu0 0.0
    %350 = vmatprep.subr.mxu0 0.0
    %351 = vmatpush1.msra.mxu0 0.0
    %352 = vmatprep.subr.mxu0 0.0
    %353 = vmatpush1.msra.mxu0 0.0
    %354 = vmatprep.subr.mxu0 0.0
    %355 = vmatpush1.msra.mxu0 0.0
    %356 = vmatprep.subr.mxu0 0.0
    %357 = vmatpush1.msra.mxu0 0.0
    %358 = vmatprep.subr.mxu0 0.0
    %359 = vmatpush1.msra.mxu0 0.0
    %360 = vmatprep.subr.mxu0 0.0
    %361 = vmatpush1.msra.mxu0 0.0
    %362 = vmatprep.subr.mxu0 0.0
    %363 = vmatpush1.msra.mxu0 0.0
    %364 = vmatprep.subr.mxu0 0.0
    %365 = vmatpush1.msra.mxu0 0.0
    %366 = vmatprep.subr.mxu0 0.0
    %367 = vmatpush1.msra.mxu0 0.0
    %368 = vmatprep.subr.mxu0 0.0
    %369 = vmatpush1.msra.mxu0 0.0
    %370 = vmatprep.subr.mxu0 0.0
    %371 = vmatpush1.msra.mxu0 0.0
    %372 = vmatprep.subr.mxu0 0.0
    %373 = vmatpush1.msra.mxu0 0.0
    %374 = vmatprep.subr.mxu0 0.0
    %375 = vmatpush1.msra.mxu0 0.0
    %376 = vmatprep.subr.mxu0 0.0
    %377 = vmatpush1.msra.mxu0 0.0
    %378 = vmatprep.subr.mxu0 0.0
    %379 = vmatpush1.msra.mxu0 0.0
    %380 = vmatprep.subr.mxu0 0.0
    %381 = vmatpush1.msra.mxu0 0.0
    %382 = vmatprep.subr.mxu0 0.0
    %383 = vmatpush1.msra.mxu0 0.0
    %384 = vmatprep.subr.mxu0 0.0
    %385 = vmatpush1.msra.mxu0 0.0
    %386 = vmatprep.subr.mxu0 0.0
    %387 = vmatpush1.msra.mxu0 0.0
    %388 = vmatprep.subr.mxu0 0.0
    %389 = vmatpush1.msra.mxu0 0.0
    %390 = vmatprep.subr.mxu0 0.0
    %391 = vmatpush1.msra.mxu0 0.0
    %392 = vmatprep.subr.mxu0 0.0
    %393 = vmatpush1.msra.mxu0 0.0
    %394 = vmatprep.subr.mxu0 0.0
    %395 = vmatpush1.msra.mxu0 0.0
    %396 = vmatprep.subr.mxu0 0.0
    %397 = vmatpush1.msra.mxu0 0.0
    %398 = vmatprep.mubr.f32.mxu0 0.0
    %399 = vmatmul.mubr.f32.gmra.mrb[0].mxu0 %v332
    %v400 = vpop.f32.mrb[0].mxu0
    %v401 = vadd.f32 0.0, %v400
    %v402 = vpop.f32.mrb[0].mxu0
    %403 = vdwg.mxu0
    %v404 = vadd.f32 %v185, %v401
    %v405 = vxor.u32 %v404, 2147483648
    %v406 = vmul.f32 %v405, 1.442695
    %v407 = vpow.pop %v406
    %v408 = vadd.f32 %v407, 1.0
    %v409 = vrcp.pop %v408
    %v410 = vmul.f32 1.0, %v409
    %v411 = vtanh.pop %v404
    %v412 = vmul.f32 %v410, %v320
    %414 = vrot.lane.b32.xlu0 %v411, 64
    %v415 = vpop.permute.xlu0 %414
    %v417 = vmul.f32 %v410, %v415
    %419 = vrot.lane.b32.xlu0 %v417, 32
    %v420 = vpop.permute.xlu0 %419
    %v422 = vadd.f32 %v412, %v420
    %v423 = vtanh.pop %v422
    %425 = vrot.lane.b32.xlu0 %v423, 64
    %v426 = vpop.permute.xlu0 %425
    %v428 = vmul.f32 %v410, %v426
    %430 = vrot.lane.b32.xlu0 %v428, 32
    %v431 = vpop.permute.xlu0 %430
    %433 = vst.msk [vmem:[#allocation2 + $0x8] sm:$0xff] %vm224, %v431
    %v434 = vsel %vm224, %v431, 0
    %436 = vmatprep.subr.mxu0 0.0
    %437 = vmatpush1.msra.mxu0 %v218
    %438 = vmatprep.subr.mxu0 0.0
    %439 = vmatpush1.msra.mxu0 %v219
    %440 = vmatprep.subr.mxu0 0.0
    %441 = vmatpush1.msra.mxu0 %v220
    %442 = vmatprep.subr.mxu0 0.0
    %443 = vmatpush1.msra.mxu0 %v221
    %444 = vmatprep.subr.mxu0 0.0
    %445 = vmatpush1.msra.mxu0 0.0
    %446 = vmatprep.subr.mxu0 0.0
    %447 = vmatpush1.msra.mxu0 0.0
    %448 = vmatprep.subr.mxu0 0.0
    %449 = vmatpush1.msra.mxu0 0.0
    %450 = vmatprep.subr.mxu0 0.0
    %451 = vmatpush1.msra.mxu0 0.0
    %452 = vmatprep.subr.mxu0 0.0
    %453 = vmatpush1.msra.mxu0 0.0
    %454 = vmatprep.subr.mxu0 0.0
    %455 = vmatpush1.msra.mxu0 0.0
    %456 = vmatprep.subr.mxu0 0.0
    %457 = vmatpush1.msra.mxu0 0.0
    %458 = vmatprep.subr.mxu0 0.0
    %459 = vmatpush1.msra.mxu0 0.0
    %460 = vmatprep.subr.mxu0 0.0
    %461 = vmatpush1.msra.mxu0 0.0
    %462 = vmatprep.subr.mxu0 0.0
    %463 = vmatpush1.msra.mxu0 0.0
    %464 = vmatprep.subr.mxu0 0.0
    %465 = vmatpush1.msra.mxu0 0.0
    %466 = vmatprep.subr.mxu0 0.0
    %467 = vmatpush1.msra.mxu0 0.0
    %468 = vmatprep.subr.mxu0 0.0
    %469 = vmatpush1.msra.mxu0 0.0
    %470 = vmatprep.subr.mxu0 0.0
    %471 = vmatpush1.msra.mxu0 0.0
    %472 = vmatprep.subr.mxu0 0.0
    %473 = vmatpush1.msra.mxu0 0.0
    %474 = vmatprep.subr.mxu0 0.0
    %475 = vmatpush1.msra.mxu0 0.0
    %476 = vmatprep.subr.mxu0 0.0
    %477 = vmatpush1.msra.mxu0 0.0
    %478 = vmatprep.subr.mxu0 0.0
    %479 = vmatpush1.msra.mxu0 0.0
    %480 = vmatprep.subr.mxu0 0.0
    %481 = vmatpush1.msra.mxu0 0.0
    %482 = vmatprep.subr.mxu0 0.0
    %483 = vmatpush1.msra.mxu0 0.0
    %484 = vmatprep.subr.mxu0 0.0
    %485 = vmatpush1.msra.mxu0 0.0
    %486 = vmatprep.subr.mxu0 0.0
    %487 = vmatpush1.msra.mxu0 0.0
    %488 = vmatprep.subr.mxu0 0.0
    %489 = vmatpush1.msra.mxu0 0.0
    %490 = vmatprep.subr.mxu0 0.0
    %491 = vmatpush1.msra.mxu0 0.0
    %492 = vmatprep.subr.mxu0 0.0
    %493 = vmatpush1.msra.mxu0 0.0
    %494 = vmatprep.subr.mxu0 0.0
    %495 = vmatpush1.msra.mxu0 0.0
    %496 = vmatprep.subr.mxu0 0.0
    %497 = vmatpush1.msra.mxu0 0.0
    %498 = vmatprep.subr.mxu0 0.0
    %499 = vmatpush1.msra.mxu0 0.0
    %500 = vmatprep.mubr.f32.mxu0 0.0
    %501 = vmatmul.mubr.f32.gmra.mrb[0].mxu0 %v434
    %v502 = vpop.f32.mrb[0].mxu0
    %v503 = vadd.f32 0.0, %v502
    %v504 = vpop.f32.mrb[0].mxu0
    %505 = vdwg.mxu0
    %v506 = vadd.f32 %v190, %v503
    %v507 = vxor.u32 %v506, 2147483648
    %v508 = vmul.f32 %v507, 1.442695
    %v509 = vpow.pop %v508
    %v510 = vadd.f32 %v509, 1.0
    %v511 = vrcp.pop %v510
    %v512 = vmul.f32 1.0, %v511
    %v513 = vtanh.pop %v506
    %v514 = vmul.f32 %v512, %v422
    %516 = vrot.lane.b32.xlu0 %v513, 64
    %v517 = vpop.permute.xlu0 %516
    %v519 = vmul.f32 %v512, %v517
    %521 = vrot.lane.b32.xlu0 %v519, 32
    %v522 = vpop.permute.xlu0 %521
    %v524 = vadd.f32 %v514, %v522
    %v525 = vtanh.pop %v524
    %527 = vrot.lane.b32.xlu0 %v525, 64
    %v528 = vpop.permute.xlu0 %527
    %v530 = vmul.f32 %v512, %v528
    %532 = vrot.lane.b32.xlu0 %v530, 32
    %v533 = vpop.permute.xlu0 %532
    %535 = vst.msk [vmem:[#allocation2 + $0x10] sm:$0xff] %vm224, %v533
    %v536 = vsel %vm224, %v533, 0
    %538 = vmatprep.subr.mxu0 0.0
    %539 = vmatpush1.msra.mxu0 %v218
    %540 = vmatprep.subr.mxu0 0.0
    %541 = vmatpush1.msra.mxu0 %v219
    %542 = vmatprep.subr.mxu0 0.0
    %543 = vmatpush1.msra.mxu0 %v220
    %544 = vmatprep.subr.mxu0 0.0
    %545 = vmatpush1.msra.mxu0 %v221
    %546 = vmatprep.subr.mxu0 0.0
    %547 = vmatpush1.msra.mxu0 0.0
    %548 = vmatprep.subr.mxu0 0.0
    %549 = vmatpush1.msra.mxu0 0.0
    %550 = vmatprep.subr.mxu0 0.0
    %551 = vmatpush1.msra.mxu0 0.0
    %552 = vmatprep.subr.mxu0 0.0
    %553 = vmatpush1.msra.mxu0 0.0
    %554 = vmatprep.subr.mxu0 0.0
    %555 = vmatpush1.msra.mxu0 0.0
    %556 = vmatprep.subr.mxu0 0.0
    %557 = vmatpush1.msra.mxu0 0.0
    %558 = vmatprep.subr.mxu0 0.0
    %559 = vmatpush1.msra.mxu0 0.0
    %560 = vmatprep.subr.mxu0 0.0
    %561 = vmatpush1.msra.mxu0 0.0
    %562 = vmatprep.subr.mxu0 0.0
    %563 = vmatpush1.msra.mxu0 0.0
    %564 = vmatprep.subr.mxu0 0.0
    %565 = vmatpush1.msra.mxu0 0.0
    %566 = vmatprep.subr.mxu0 0.0
    %567 = vmatpush1.msra.mxu0 0.0
    %568 = vmatprep.subr.mxu0 0.0
    %569 = vmatpush1.msra.mxu0 0.0
    %570 = vmatprep.subr.mxu0 0.0
    %571 = vmatpush1.msra.mxu0 0.0
    %572 = vmatprep.subr.mxu0 0.0
    %573 = vmatpush1.msra.mxu0 0.0
    %574 = vmatprep.subr.mxu0 0.0
    %575 = vmatpush1.msra.mxu0 0.0
    %576 = vmatprep.subr.mxu0 0.0
    %577 = vmatpush1.msra.mxu0 0.0
    %578 = vmatprep.subr.mxu0 0.0
    %579 = vmatpush1.msra.mxu0 0.0
    %580 = vmatprep.subr.mxu0 0.0
    %581 = vmatpush1.msra.mxu0 0.0
    %582 = vmatprep.subr.mxu0 0.0
    %583 = vmatpush1.msra.mxu0 0.0
    %584 = vmatprep.subr.mxu0 0.0
    %585 = vmatpush1.msra.mxu0 0.0
    %586 = vmatprep.subr.mxu0 0.0
    %587 = vmatpush1.msra.mxu0 0.0
    %588 = vmatprep.subr.mxu0 0.0
    %589 = vmatpush1.msra.mxu0 0.0
    %590 = vmatprep.subr.mxu0 0.0
    %591 = vmatpush1.msra.mxu0 0.0
    %592 = vmatprep.subr.mxu0 0.0
    %593 = vmatpush1.msra.mxu0 0.0
    %594 = vmatprep.subr.mxu0 0.0
    %595 = vmatpush1.msra.mxu0 0.0
    %596 = vmatprep.subr.mxu0 0.0
    %597 = vmatpush1.msra.mxu0 0.0
    %598 = vmatprep.subr.mxu0 0.0
    %599 = vmatpush1.msra.mxu0 0.0
    %600 = vmatprep.subr.mxu0 0.0
    %601 = vmatpush1.msra.mxu0 0.0
    %602 = vmatprep.mubr.f32.mxu0 0.0
    %603 = vmatmul.mubr.f32.gmra.mrb[0].mxu0 %v536
    %v604 = vpop.f32.mrb[0].mxu0
    %v605 = vadd.f32 0.0, %v604
    %v606 = vpop.f32.mrb[0].mxu0
    %607 = vdwg.mxu0
    %v608 = vadd.f32 %v195, %v605
    %v609 = vxor.u32 %v608, 2147483648
    %v610 = vmul.f32 %v609, 1.442695
    %v611 = vpow.pop %v610
    %v612 = vadd.f32 %v611, 1.0
    %v613 = vrcp.pop %v612
    %v614 = vmul.f32 1.0, %v613
    %v615 = vtanh.pop %v608
    %v616 = vmul.f32 %v614, %v524
    %618 = vrot.lane.b32.xlu0 %v615, 64
    %v619 = vpop.permute.xlu0 %618
    %v621 = vmul.f32 %v614, %v619
    %623 = vrot.lane.b32.xlu0 %v621, 32
    %v624 = vpop.permute.xlu0 %623
    %v626 = vadd.f32 %v616, %v624
    %v627 = vtanh.pop %v626
    %629 = vrot.lane.b32.xlu0 %v627, 64
    %v630 = vpop.permute.xlu0 %629
    %v632 = vmul.f32 %v614, %v630
    %634 = vrot.lane.b32.xlu0 %v632, 32
    %v635 = vpop.permute.xlu0 %634
    %637 = vst.msk [vmem:[#allocation2 + $0x18] sm:$0xff] %vm224, %v635
    %v638 = vsel %vm224, %v635, 0
    %640 = vmatprep.subr.mxu0 0.0
    %641 = vmatpush1.msra.mxu0 %v218
    %642 = vmatprep.subr.mxu0 0.0
    %643 = vmatpush1.msra.mxu0 %v219
    %644 = vmatprep.subr.mxu0 0.0
    %645 = vmatpush1.msra.mxu0 %v220
    %646 = vmatprep.subr.mxu0 0.0
    %647 = vmatpush1.msra.mxu0 %v221
    %648 = vmatprep.subr.mxu0 0.0
    %649 = vmatpush1.msra.mxu0 0.0
    %650 = vmatprep.subr.mxu0 0.0
    %651 = vmatpush1.msra.mxu0 0.0
    %652 = vmatprep.subr.mxu0 0.0
    %653 = vmatpush1.msra.mxu0 0.0
    %654 = vmatprep.subr.mxu0 0.0
    %655 = vmatpush1.msra.mxu0 0.0
    %656 = vmatprep.subr.mxu0 0.0
    %657 = vmatpush1.msra.mxu0 0.0
    %658 = vmatprep.subr.mxu0 0.0
    %659 = vmatpush1.msra.mxu0 0.0
    %660 = vmatprep.subr.mxu0 0.0
    %661 = vmatpush1.msra.mxu0 0.0
    %662 = vmatprep.subr.mxu0 0.0
    %663 = vmatpush1.msra.mxu0 0.0
    %664 = vmatprep.subr.mxu0 0.0
    %665 = vmatpush1.msra.mxu0 0.0
    %666 = vmatprep.subr.mxu0 0.0
    %667 = vmatpush1.msra.mxu0 0.0
    %668 = vmatprep.subr.mxu0 0.0
    %669 = vmatpush1.msra.mxu0 0.0
    %670 = vmatprep.subr.mxu0 0.0
    %671 = vmatpush1.msra.mxu0 0.0
    %672 = vmatprep.subr.mxu0 0.0
    %673 = vmatpush1.msra.mxu0 0.0
    %674 = vmatprep.subr.mxu0 0.0
    %675 = vmatpush1.msra.mxu0 0.0
    %676 = vmatprep.subr.mxu0 0.0
    %677 = vmatpush1.msra.mxu0 0.0
    %678 = vmatprep.subr.mxu0 0.0
    %679 = vmatpush1.msra.mxu0 0.0
    %680 = vmatprep.subr.mxu0 0.0
    %681 = vmatpush1.msra.mxu0 0.0
    %682 = vmatprep.subr.mxu0 0.0
    %683 = vmatpush1.msra.mxu0 0.0
    %684 = vmatprep.subr.mxu0 0.0
    %685 = vmatpush1.msra.mxu0 0.0
    %686 = vmatprep.subr.mxu0 0.0
    %687 = vmatpush1.msra.mxu0 0.0
    %688 = vmatprep.subr.mxu0 0.0
    %689 = vmatpush1.msra.mxu0 0.0
    %690 = vmatprep.subr.mxu0 0.0
    %691 = vmatpush1.msra.mxu0 0.0
    %692 = vmatprep.subr.mxu0 0.0
    %693 = vmatpush1.msra.mxu0 0.0
    %694 = vmatprep.subr.mxu0 0.0
    %695 = vmatpush1.msra.mxu0 0.0
    %696 = vmatprep.subr.mxu0 0.0
    %697 = vmatpush1.msra.mxu0 0.0
    %698 = vmatprep.subr.mxu0 0.0
    %699 = vmatpush1.msra.mxu0 0.0
    %700 = vmatprep.subr.mxu0 0.0
    %701 = vmatpush1.msra.mxu0 0.0
    %702 = vmatprep.subr.mxu0 0.0
    %703 = vmatpush1.msra.mxu0 0.0
    %704 = vmatprep.mubr.f32.mxu0 0.0
    %705 = vmatmul.mubr.f32.gmra.mrb[0].mxu0 %v638
    %v706 = vpop.f32.mrb[0].mxu0
    %v707 = vadd.f32 0.0, %v706
    %v708 = vpop.f32.mrb[0].mxu0
    %709 = vdwg.mxu0
    %v710 = vadd.f32 %v200, %v707
    %v711 = vxor.u32 %v710, 2147483648
    %v712 = vmul.f32 %v711, 1.442695
    %v713 = vpow.pop %v712
    %v714 = vadd.f32 %v713, 1.0
    %v715 = vrcp.pop %v714
    %v716 = vmul.f32 1.0, %v715
    %v717 = vtanh.pop %v710
    %v718 = vmul.f32 %v716, %v626
    %720 = vrot.lane.b32.xlu0 %v717, 64
    %v721 = vpop.permute.xlu0 %720
    %v723 = vmul.f32 %v716, %v721
    %725 = vrot.lane.b32.xlu0 %v723, 32
    %v726 = vpop.permute.xlu0 %725
    %v728 = vadd.f32 %v718, %v726
    %v729 = vtanh.pop %v728
    %731 = vrot.lane.b32.xlu0 %v729, 64
    %v732 = vpop.permute.xlu0 %731
    %v734 = vmul.f32 %v716, %v732
    %736 = vrot.lane.b32.xlu0 %v734, 32
    %v737 = vpop.permute.xlu0 %736
    %739 = vst.msk [vmem:[#allocation2 + $0x20] sm:$0xff] %vm224, %v737
    %v740 = vsel %vm224, %v737, 0
    %742 = vmatprep.subr.mxu0 0.0
    %743 = vmatpush1.msra.mxu0 %v218
    %744 = vmatprep.subr.mxu0 0.0
    %745 = vmatpush1.msra.mxu0 %v219
    %746 = vmatprep.subr.mxu0 0.0
    %747 = vmatpush1.msra.mxu0 %v220
    %748 = vmatprep.subr.mxu0 0.0
    %749 = vmatpush1.msra.mxu0 %v221
    %750 = vmatprep.subr.mxu0 0.0
    %751 = vmatpush1.msra.mxu0 0.0
    %752 = vmatprep.subr.mxu0 0.0
    %753 = vmatpush1.msra.mxu0 0.0
    %754 = vmatprep.subr.mxu0 0.0
    %755 = vmatpush1.msra.mxu0 0.0
    %756 = vmatprep.subr.mxu0 0.0
    %757 = vmatpush1.msra.mxu0 0.0
    %758 = vmatprep.subr.mxu0 0.0
    %759 = vmatpush1.msra.mxu0 0.0
    %760 = vmatprep.subr.mxu0 0.0
    %761 = vmatpush1.msra.mxu0 0.0
    %762 = vmatprep.subr.mxu0 0.0
    %763 = vmatpush1.msra.mxu0 0.0
    %764 = vmatprep.subr.mxu0 0.0
    %765 = vmatpush1.msra.mxu0 0.0
    %766 = vmatprep.subr.mxu0 0.0
    %767 = vmatpush1.msra.mxu0 0.0
    %768 = vmatprep.subr.mxu0 0.0
    %769 = vmatpush1.msra.mxu0 0.0
    %770 = vmatprep.subr.mxu0 0.0
    %771 = vmatpush1.msra.mxu0 0.0
    %772 = vmatprep.subr.mxu0 0.0
    %773 = vmatpush1.msra.mxu0 0.0
    %774 = vmatprep.subr.mxu0 0.0
    %775 = vmatpush1.msra.mxu0 0.0
    %776 = vmatprep.subr.mxu0 0.0
    %777 = vmatpush1.msra.mxu0 0.0
    %778 = vmatprep.subr.mxu0 0.0
    %779 = vmatpush1.msra.mxu0 0.0
    %780 = vmatprep.subr.mxu0 0.0
    %781 = vmatpush1.msra.mxu0 0.0
    %782 = vmatprep.subr.mxu0 0.0
    %783 = vmatpush1.msra.mxu0 0.0
    %784 = vmatprep.subr.mxu0 0.0
    %785 = vmatpush1.msra.mxu0 0.0
    %786 = vmatprep.subr.mxu0 0.0
    %787 = vmatpush1.msra.mxu0 0.0
    %788 = vmatprep.subr.mxu0 0.0
    %789 = vmatpush1.msra.mxu0 0.0
    %790 = vmatprep.subr.mxu0 0.0
    %791 = vmatpush1.msra.mxu0 0.0
    %792 = vmatprep.subr.mxu0 0.0
    %793 = vmatpush1.msra.mxu0 0.0
    %794 = vmatprep.subr.mxu0 0.0
    %795 = vmatpush1.msra.mxu0 0.0
    %796 = vmatprep.subr.mxu0 0.0
    %797 = vmatpush1.msra.mxu0 0.0
    %798 = vmatprep.subr.mxu0 0.0
    %799 = vmatpush1.msra.mxu0 0.0
    %800 = vmatprep.subr.mxu0 0.0
    %801 = vmatpush1.msra.mxu0 0.0
    %802 = vmatprep.subr.mxu0 0.0
    %803 = vmatpush1.msra.mxu0 0.0
    %804 = vmatprep.subr.mxu0 0.0
    %805 = vmatpush1.msra.mxu0 0.0
    %806 = vmatprep.mubr.f32.mxu0 0.0
    %807 = vmatmul.mubr.f32.gmra.mrb[0].mxu0 %v740
    %v808 = vpop.f32.mrb[0].mxu0
    %v809 = vadd.f32 0.0, %v808
    %v810 = vpop.f32.mrb[0].mxu0
    %811 = vdwg.mxu0
    %v812 = vadd.f32 %v205, %v809
    %v813 = vxor.u32 %v812, 2147483648
    %v814 = vmul.f32 %v813, 1.442695
    %v815 = vpow.pop %v814
    %v816 = vadd.f32 %v815, 1.0
    %v817 = vrcp.pop %v816
    %v818 = vmul.f32 1.0, %v817
    %v819 = vtanh.pop %v812
    %v820 = vmul.f32 %v818, %v728
    %822 = vrot.lane.b32.xlu0 %v819, 64
    %v823 = vpop.permute.xlu0 %822
    %v825 = vmul.f32 %v818, %v823
    %827 = vrot.lane.b32.xlu0 %v825, 32
    %v828 = vpop.permute.xlu0 %827
    %v830 = vadd.f32 %v820, %v828
    %v831 = vtanh.pop %v830
    %833 = vrot.lane.b32.xlu0 %v831, 64
    %v834 = vpop.permute.xlu0 %833
    %v836 = vmul.f32 %v818, %v834
    %838 = vrot.lane.b32.xlu0 %v836, 32
    %v839 = vpop.permute.xlu0 %838
    %841 = vst.msk [vmem:[#allocation2 + $0x28] sm:$0xff] %vm224, %v839
    %v842 = vsel %vm224, %v839, 0
    %844 = vmatprep.subr.mxu0 0.0
    %845 = vmatpush1.msra.mxu0 %v218
    %846 = vmatprep.subr.mxu0 0.0
    %847 = vmatpush1.msra.mxu0 %v219
    %848 = vmatprep.subr.mxu0 0.0
    %849 = vmatpush1.msra.mxu0 %v220
    %850 = vmatprep.subr.mxu0 0.0
    %851 = vmatpush1.msra.mxu0 %v221
    %852 = vmatprep.subr.mxu0 0.0
    %853 = vmatpush1.msra.mxu0 0.0
    %854 = vmatprep.subr.mxu0 0.0
    %855 = vmatpush1.msra.mxu0 0.0
    %856 = vmatprep.subr.mxu0 0.0
    %857 = vmatpush1.msra.mxu0 0.0
    %858 = vmatprep.subr.mxu0 0.0
    %859 = vmatpush1.msra.mxu0 0.0
    %860 = vmatprep.subr.mxu0 0.0
    %861 = vmatpush1.msra.mxu0 0.0
    %862 = vmatprep.subr.mxu0 0.0
    %863 = vmatpush1.msra.mxu0 0.0
    %864 = vmatprep.subr.mxu0 0.0
    %865 = vmatpush1.msra.mxu0 0.0
    %866 = vmatprep.subr.mxu0 0.0
    %867 = vmatpush1.msra.mxu0 0.0
    %868 = vmatprep.subr.mxu0 0.0
    %869 = vmatpush1.msra.mxu0 0.0
    %870 = vmatprep.subr.mxu0 0.0
    %871 = vmatpush1.msra.mxu0 0.0
    %872 = vmatprep.subr.mxu0 0.0
    %873 = vmatpush1.msra.mxu0 0.0
    %874 = vmatprep.subr.mxu0 0.0
    %875 = vmatpush1.msra.mxu0 0.0
    %876 = vmatprep.subr.mxu0 0.0
    %877 = vmatpush1.msra.mxu0 0.0
    %878 = vmatprep.subr.mxu0 0.0
    %879 = vmatpush1.msra.mxu0 0.0
    %880 = vmatprep.subr.mxu0 0.0
    %881 = vmatpush1.msra.mxu0 0.0
    %882 = vmatprep.subr.mxu0 0.0
    %883 = vmatpush1.msra.mxu0 0.0
    %884 = vmatprep.subr.mxu0 0.0
    %885 = vmatpush1.msra.mxu0 0.0
    %886 = vmatprep.subr.mxu0 0.0
    %887 = vmatpush1.msra.mxu0 0.0
    %888 = vmatprep.subr.mxu0 0.0
    %889 = vmatpush1.msra.mxu0 0.0
    %890 = vmatprep.subr.mxu0 0.0
    %891 = vmatpush1.msra.mxu0 0.0
    %892 = vmatprep.subr.mxu0 0.0
    %893 = vmatpush1.msra.mxu0 0.0
    %894 = vmatprep.subr.mxu0 0.0
    %895 = vmatpush1.msra.mxu0 0.0
    %896 = vmatprep.subr.mxu0 0.0
    %897 = vmatpush1.msra.mxu0 0.0
    %898 = vmatprep.subr.mxu0 0.0
    %899 = vmatpush1.msra.mxu0 0.0
    %900 = vmatprep.subr.mxu0 0.0
    %901 = vmatpush1.msra.mxu0 0.0
    %902 = vmatprep.subr.mxu0 0.0
    %903 = vmatpush1.msra.mxu0 0.0
    %904 = vmatprep.subr.mxu0 0.0
    %905 = vmatpush1.msra.mxu0 0.0
    %906 = vmatprep.subr.mxu0 0.0
    %907 = vmatpush1.msra.mxu0 0.0
    %908 = vmatprep.mubr.f32.mxu0 0.0
    %909 = vmatmul.mubr.f32.gmra.mrb[0].mxu0 %v842
    %v910 = vpop.f32.mrb[0].mxu0
    %v911 = vadd.f32 0.0, %v910
    %v912 = vpop.f32.mrb[0].mxu0
    %913 = vdwg.mxu0
    %v914 = vadd.f32 %v210, %v911
    %v915 = vxor.u32 %v914, 2147483648
    %v916 = vmul.f32 %v915, 1.442695
    %v917 = vpow.pop %v916
    %v918 = vadd.f32 %v917, 1.0
    %v919 = vrcp.pop %v918
    %v920 = vmul.f32 1.0, %v919
    %v921 = vtanh.pop %v914
    %v922 = vmul.f32 %v920, %v830
    %924 = vrot.lane.b32.xlu0 %v921, 64
    %v925 = vpop.permute.xlu0 %924
    %v927 = vmul.f32 %v920, %v925
    %929 = vrot.lane.b32.xlu0 %v927, 32
    %v930 = vpop.permute.xlu0 %929
    %v932 = vadd.f32 %v922, %v930
    %v933 = vtanh.pop %v932
    %935 = vrot.lane.b32.xlu0 %v933, 64
    %v936 = vpop.permute.xlu0 %935
    %v938 = vmul.f32 %v920, %v936
    %940 = vrot.lane.b32.xlu0 %v938, 32
    %v941 = vpop.permute.xlu0 %940
    %943 = vst.msk [vmem:[#allocation2 + $0x30] sm:$0xff] %vm224, %v941
    %v944 = vsel %vm224, %v941, 0
    %946 = vmatprep.subr.mxu0 0.0
    %947 = vmatpush1.msra.mxu0 %v218
    %948 = vmatprep.subr.mxu0 0.0
    %949 = vmatpush1.msra.mxu0 %v219
    %950 = vmatprep.subr.mxu0 0.0
    %951 = vmatpush1.msra.mxu0 %v220
    %952 = vmatprep.subr.mxu0 0.0
    %953 = vmatpush1.msra.mxu0 %v221
    %954 = vmatprep.subr.mxu0 0.0
    %955 = vmatpush1.msra.mxu0 0.0
    %956 = vmatprep.subr.mxu0 0.0
    %957 = vmatpush1.msra.mxu0 0.0
    %958 = vmatprep.subr.mxu0 0.0
    %959 = vmatpush1.msra.mxu0 0.0
    %960 = vmatprep.subr.mxu0 0.0
    %961 = vmatpush1.msra.mxu0 0.0
    %962 = vmatprep.subr.mxu0 0.0
    %963 = vmatpush1.msra.mxu0 0.0
    %964 = vmatprep.subr.mxu0 0.0
    %965 = vmatpush1.msra.mxu0 0.0
    %966 = vmatprep.subr.mxu0 0.0
    %967 = vmatpush1.msra.mxu0 0.0
    %968 = vmatprep.subr.mxu0 0.0
    %969 = vmatpush1.msra.mxu0 0.0
    %970 = vmatprep.subr.mxu0 0.0
    %971 = vmatpush1.msra.mxu0 0.0
    %972 = vmatprep.subr.mxu0 0.0
    %973 = vmatpush1.msra.mxu0 0.0
    %974 = vmatprep.subr.mxu0 0.0
    %975 = vmatpush1.msra.mxu0 0.0
    %976 = vmatprep.subr.mxu0 0.0
    %977 = vmatpush1.msra.mxu0 0.0
    %978 = vmatprep.subr.mxu0 0.0
    %979 = vmatpush1.msra.mxu0 0.0
    %980 = vmatprep.subr.mxu0 0.0
    %981 = vmatpush1.msra.mxu0 0.0
    %982 = vmatprep.subr.mxu0 0.0
    %983 = vmatpush1.msra.mxu0 0.0
    %984 = vmatprep.subr.mxu0 0.0
    %985 = vmatpush1.msra.mxu0 0.0
    %986 = vmatprep.subr.mxu0 0.0
    %987 = vmatpush1.msra.mxu0 0.0
    %988 = vmatprep.subr.mxu0 0.0
    %989 = vmatpush1.msra.mxu0 0.0
    %990 = vmatprep.subr.mxu0 0.0
    %991 = vmatpush1.msra.mxu0 0.0
    %992 = vmatprep.subr.mxu0 0.0
    %993 = vmatpush1.msra.mxu0 0.0
    %994 = vmatprep.subr.mxu0 0.0
    %995 = vmatpush1.msra.mxu0 0.0
    %996 = vmatprep.subr.mxu0 0.0
    %997 = vmatpush1.msra.mxu0 0.0
    %998 = vmatprep.subr.mxu0 0.0
    %999 = vmatpush1.msra.mxu0 0.0
    %1000 = vmatprep.subr.mxu0 0.0
    %1001 = vmatpush1.msra.mxu0 0.0
    %1002 = vmatprep.subr.mxu0 0.0
    %1003 = vmatpush1.msra.mxu0 0.0
    %1004 = vmatprep.subr.mxu0 0.0
    %1005 = vmatpush1.msra.mxu0 0.0
    %1006 = vmatprep.subr.mxu0 0.0
    %1007 = vmatpush1.msra.mxu0 0.0
    %1008 = vmatprep.subr.mxu0 0.0
    %1009 = vmatpush1.msra.mxu0 0.0
    %1010 = vmatprep.mubr.f32.mxu0 0.0
    %1011 = vmatmul.mubr.f32.gmra.mrb[0].mxu0 %v944
    %v1012 = vpop.f32.mrb[0].mxu0
    %v1013 = vadd.f32 0.0, %v1012
    %v1014 = vpop.f32.mrb[0].mxu0
    %1015 = vdwg.mxu0
    %v1016 = vadd.f32 %v215, %v1013
    %v1017 = vxor.u32 %v1016, 2147483648
    %v1018 = vmul.f32 %v1017, 1.442695
    %v1019 = vpow.pop %v1018
    %v1020 = vadd.f32 %v1019, 1.0
    %v1021 = vrcp.pop %v1020
    %v1022 = vmul.f32 1.0, %v1021
    %v1023 = vtanh.pop %v1016
    %v1024 = vmul.f32 %v1022, %v932
    %1026 = vrot.lane.b32.xlu0 %v1023, 64
    %v1027 = vpop.permute.xlu0 %1026
    %v1029 = vmul.f32 %v1022, %v1027
    %1031 = vrot.lane.b32.xlu0 %v1029, 32
    %v1032 = vpop.permute.xlu0 %1031
    %v1034 = vadd.f32 %v1024, %v1032
    %v1035 = vtanh.pop %v1034
    %1037 = vrot.lane.b32.xlu0 %v1035, 64
    %v1038 = vpop.permute.xlu0 %1037
    %v1040 = vmul.f32 %v1022, %v1038
    %1042 = vrot.lane.b32.xlu0 %v1040, 32
    %v1043 = vpop.permute.xlu0 %1042
    %1045 = vst.msk [vmem:[#allocation2 + $0x38] sm:$0xff] %vm224, %v1043
    %v1046 = vld [vmem:[#allocation2] sm:$0xff]
    %v1047 = vld [vmem:[#allocation2 + $0x8] sm:$0xff]
    %v1048 = vld [vmem:[#allocation2 + $0x10] sm:$0xff]
    %v1049 = vld [vmem:[#allocation2 + $0x18] sm:$0xff]
    %v1050 = vld [vmem:[#allocation2 + $0x20] sm:$0xff]
    %v1051 = vld [vmem:[#allocation2 + $0x28] sm:$0xff]
    %v1052 = vld [vmem:[#allocation2 + $0x30] sm:$0xff]
    %v1053 = vld [vmem:[#allocation2 + $0x38] sm:$0xff]
    %v1054 = vld [vmem:[%s6] sm:$0xff]
    %v1055 = vld [vmem:[%s6 + $0x8] sm:$0xff]
    %v1056 = vld [vmem:[%s6 + $0x10] sm:$0xff]
    %v1057 = vld [vmem:[%s6 + $0x18] sm:$0xff]
    %v1058 = vld [vmem:[%s8] sm:$0x1]
    %v1060 = vlaneseq
    %v1061 = vshrl.u32 %v1060, 7
    %v1062 = vsub.s32 0, %v1061
    %v1063 = vrot.slane %v1058, %v1062
    %v1066 = vsel %vm224, %v1046, 0
    %v1069 = vsel %vm224, %v1047, 0
    %v1072 = vsel %vm224, %v1048, 0
    %v1075 = vsel %vm224, %v1049, 0
    %v1078 = vsel %vm224, %v1050, 0
    %v1081 = vsel %vm224, %v1051, 0
    %v1084 = vsel %vm224, %v1052, 0
    %v1087 = vsel %vm224, %v1053, 0
    %1089 = vmatprep.subr.mxu0 0.0
    %1090 = vmatpush1.msra.mxu0 %v1054
    %1091 = vmatprep.subr.mxu0 0.0
    %1092 = vmatpush1.msra.mxu0 %v1055
    %1093 = vmatprep.subr.mxu0 0.0
    %1094 = vmatpush1.msra.mxu0 %v1056
    %1095 = vmatprep.subr.mxu0 0.0
    %1096 = vmatpush1.msra.mxu0 %v1057
    %1097 = vmatprep.subr.mxu0 0.0
    %1098 = vmatpush1.msra.mxu0 0.0
    %1099 = vmatprep.subr.mxu0 0.0
    %1100 = vmatpush1.msra.mxu0 0.0
    %1101 = vmatprep.subr.mxu0 0.0
    %1102 = vmatpush1.msra.mxu0 0.0
    %1103 = vmatprep.subr.mxu0 0.0
    %1104 = vmatpush1.msra.mxu0 0.0
    %1105 = vmatprep.subr.mxu0 0.0
    %1106 = vmatpush1.msra.mxu0 0.0
    %1107 = vmatprep.subr.mxu0 0.0
    %1108 = vmatpush1.msra.mxu0 0.0
    %1109 = vmatprep.subr.mxu0 0.0
    %1110 = vmatpush1.msra.mxu0 0.0
    %1111 = vmatprep.subr.mxu0 0.0
    %1112 = vmatpush1.msra.mxu0 0.0
    %1113 = vmatprep.subr.mxu0 0.0
    %1114 = vmatpush1.msra.mxu0 0.0
    %1115 = vmatprep.subr.mxu0 0.0
    %1116 = vmatpush1.msra.mxu0 0.0
    %1117 = vmatprep.subr.mxu0 0.0
    %1118 = vmatpush1.msra.mxu0 0.0
    %1119 = vmatprep.subr.mxu0 0.0
    %1120 = vmatpush1.msra.mxu0 0.0
    %1121 = vmatprep.subr.mxu0 0.0
    %1122 = vmatpush1.msra.mxu0 0.0
    %1123 = vmatprep.subr.mxu0 0.0
    %1124 = vmatpush1.msra.mxu0 0.0
    %1125 = vmatprep.subr.mxu0 0.0
    %1126 = vmatpush1.msra.mxu0 0.0
    %1127 = vmatprep.subr.mxu0 0.0
    %1128 = vmatpush1.msra.mxu0 0.0
    %1129 = vmatprep.subr.mxu0 0.0
    %1130 = vmatpush1.msra.mxu0 0.0
    %1131 = vmatprep.subr.mxu0 0.0
    %1132 = vmatpush1.msra.mxu0 0.0
    %1133 = vmatprep.subr.mxu0 0.0
    %1134 = vmatpush1.msra.mxu0 0.0
    %1135 = vmatprep.subr.mxu0 0.0
    %1136 = vmatpush1.msra.mxu0 0.0
    %1137 = vmatprep.subr.mxu0 0.0
    %1138 = vmatpush1.msra.mxu0 0.0
    %1139 = vmatprep.subr.mxu0 0.0
    %1140 = vmatpush1.msra.mxu0 0.0
    %1141 = vmatprep.subr.mxu0 0.0
    %1142 = vmatpush1.msra.mxu0 0.0
    %1143 = vmatprep.subr.mxu0 0.0
    %1144 = vmatpush1.msra.mxu0 0.0
    %1145 = vmatprep.subr.mxu0 0.0
    %1146 = vmatpush1.msra.mxu0 0.0
    %1147 = vmatprep.subr.mxu0 0.0
    %1148 = vmatpush1.msra.mxu0 0.0
    %1149 = vmatprep.subr.mxu0 0.0
    %1150 = vmatpush1.msra.mxu0 0.0
    %1151 = vmatprep.subr.mxu0 0.0
    %1152 = vmatpush1.msra.mxu0 0.0
    %1153 = vmatprep.mubr.f32.mxu0 0.0
    %1154 = vmatmul.mubr.f32.gmra.mrb[0].mxu0 %v1066
    %v1155 = vpop.f32.mrb[0].mxu0
    %v1156 = vadd.f32 %v1063, %v1155
    %v1157 = vpop.f32.mrb[0].mxu0
    %1158 = vmatprep.mubr.f32.mxu0 0.0
    %1159 = vmatmul.mubr.f32.gmra.mrb[0].mxu0 %v1069
    %v1160 = vpop.f32.mrb[0].mxu0
    %v1161 = vadd.f32 %v1063, %v1160
    %v1162 = vpop.f32.mrb[0].mxu0
    %1163 = vmatprep.mubr.f32.mxu0 0.0
    %1164 = vmatmul.mubr.f32.gmra.mrb[0].mxu0 %v1072
    %v1165 = vpop.f32.mrb[0].mxu0
    %v1166 = vadd.f32 %v1063, %v1165
    %v1167 = vpop.f32.mrb[0].mxu0
    %1168 = vmatprep.mubr.f32.mxu0 0.0
    %1169 = vmatmul.mubr.f32.gmra.mrb[0].mxu0 %v1075
    %v1170 = vpop.f32.mrb[0].mxu0
    %v1171 = vadd.f32 %v1063, %v1170
    %v1172 = vpop.f32.mrb[0].mxu0
    %1173 = vmatprep.mubr.f32.mxu0 0.0
    %1174 = vmatmul.mubr.f32.gmra.mrb[0].mxu0 %v1078
    %v1175 = vpop.f32.mrb[0].mxu0
    %v1176 = vadd.f32 %v1063, %v1175
    %v1177 = vpop.f32.mrb[0].mxu0
    %1178 = vmatprep.mubr.f32.mxu0 0.0
    %1179 = vmatmul.mubr.f32.gmra.mrb[0].mxu0 %v1081
    %v1180 = vpop.f32.mrb[0].mxu0
    %v1181 = vadd.f32 %v1063, %v1180
    %v1182 = vpop.f32.mrb[0].mxu0
    %1183 = vmatprep.mubr.f32.mxu0 0.0
    %1184 = vmatmul.mubr.f32.gmra.mrb[0].mxu0 %v1084
    %v1185 = vpop.f32.mrb[0].mxu0
    %v1186 = vadd.f32 %v1063, %v1185
    %v1187 = vpop.f32.mrb[0].mxu0
    %1188 = vmatprep.mubr.f32.mxu0 0.0
    %1189 = vmatmul.mubr.f32.gmra.mrb[0].mxu0 %v1087
    %v1190 = vpop.f32.mrb[0].mxu0
    %v1191 = vadd.f32 %v1063, %v1190
    %v1192 = vpop.f32.mrb[0].mxu0
    %1193 = vdwg.mxu0
    %v1194 = vld [vmem:[%s7] sm:$0xff]
    %v1195 = vld [vmem:[%s7 + $0x8] sm:$0xff]
    %v1196 = vld [vmem:[%s7 + $0x10] sm:$0xff]
    %v1197 = vld [vmem:[%s7 + $0x18] sm:$0xff]
    %s1198 = scalar_lea.vmem %s1, 8
    %v1199 = vld [vmem:[%s1198] sm:$0xff]
    %s1200 = scalar_lea.vmem [#allocation3], 8
    %v1201 = vld [vmem:[%s1200] sm:$0xff]
    %v1203 = vsel %vm224, %v1199, 0
    %1205 = vmatprep.subr.mxu0 0.0
    %1206 = vmatpush1.msra.mxu0 %v1194
    %1207 = vmatprep.subr.mxu0 0.0
    %1208 = vmatpush1.msra.mxu0 %v1195
    %1209 = vmatprep.subr.mxu0 0.0
    %1210 = vmatpush1.msra.mxu0 %v1196
    %1211 = vmatprep.subr.mxu0 0.0
    %1212 = vmatpush1.msra.mxu0 %v1197
    %1213 = vmatprep.subr.mxu0 0.0
    %1214 = vmatpush1.msra.mxu0 0.0
    %1215 = vmatprep.subr.mxu0 0.0
    %1216 = vmatpush1.msra.mxu0 0.0
    %1217 = vmatprep.subr.mxu0 0.0
    %1218 = vmatpush1.msra.mxu0 0.0
    %1219 = vmatprep.subr.mxu0 0.0
    %1220 = vmatpush1.msra.mxu0 0.0
    %1221 = vmatprep.subr.mxu0 0.0
    %1222 = vmatpush1.msra.mxu0 0.0
    %1223 = vmatprep.subr.mxu0 0.0
    %1224 = vmatpush1.msra.mxu0 0.0
    %1225 = vmatprep.subr.mxu0 0.0
    %1226 = vmatpush1.msra.mxu0 0.0
    %1227 = vmatprep.subr.mxu0 0.0
    %1228 = vmatpush1.msra.mxu0 0.0
    %1229 = vmatprep.subr.mxu0 0.0
    %1230 = vmatpush1.msra.mxu0 0.0
    %1231 = vmatprep.subr.mxu0 0.0
    %1232 = vmatpush1.msra.mxu0 0.0
    %1233 = vmatprep.subr.mxu0 0.0
    %1234 = vmatpush1.msra.mxu0 0.0
    %1235 = vmatprep.subr.mxu0 0.0
    %1236 = vmatpush1.msra.mxu0 0.0
    %1237 = vmatprep.subr.mxu0 0.0
    %1238 = vmatpush1.msra.mxu0 0.0
    %1239 = vmatprep.subr.mxu0 0.0
    %1240 = vmatpush1.msra.mxu0 0.0
    %1241 = vmatprep.subr.mxu0 0.0
    %1242 = vmatpush1.msra.mxu0 0.0
    %1243 = vmatprep.subr.mxu0 0.0
    %1244 = vmatpush1.msra.mxu0 0.0
    %1245 = vmatprep.subr.mxu0 0.0
    %1246 = vmatpush1.msra.mxu0 0.0
    %1247 = vmatprep.subr.mxu0 0.0
    %1248 = vmatpush1.msra.mxu0 0.0
    %1249 = vmatprep.subr.mxu0 0.0
    %1250 = vmatpush1.msra.mxu0 0.0
    %1251 = vmatprep.subr.mxu0 0.0
    %1252 = vmatpush1.msra.mxu0 0.0
    %1253 = vmatprep.subr.mxu0 0.0
    %1254 = vmatpush1.msra.mxu0 0.0
    %1255 = vmatprep.subr.mxu0 0.0
    %1256 = vmatpush1.msra.mxu0 0.0
    %1257 = vmatprep.subr.mxu0 0.0
    %1258 = vmatpush1.msra.mxu0 0.0
    %1259 = vmatprep.subr.mxu0 0.0
    %1260 = vmatpush1.msra.mxu0 0.0
    %1261 = vmatprep.subr.mxu0 0.0
    %1262 = vmatpush1.msra.mxu0 0.0
    %1263 = vmatprep.subr.mxu0 0.0
    %1264 = vmatpush1.msra.mxu0 0.0
    %1265 = vmatprep.subr.mxu0 0.0
    %1266 = vmatpush1.msra.mxu0 0.0
    %1267 = vmatprep.subr.mxu0 0.0
    %1268 = vmatpush1.msra.mxu0 0.0
    %1269 = vmatprep.mubr.f32.mxu0 0.0
    %1270 = vmatmul.mubr.f32.gmra.mrb[0].mxu0 %v1203
    %v1271 = vpop.f32.mrb[0].mxu0
    %v1272 = vadd.f32 0.0, %v1271
    %v1273 = vpop.f32.mrb[0].mxu0
    %1274 = vdwg.mxu0
    %v1275 = vadd.f32 %v1156, %v1272
    %v1276 = vxor.u32 %v1275, 2147483648
    %v1277 = vmul.f32 %v1276, 1.442695
    %v1278 = vpow.pop %v1277
    %v1279 = vadd.f32 %v1278, 1.0
    %v1280 = vrcp.pop %v1279
    %v1281 = vmul.f32 1.0, %v1280
    %v1282 = vtanh.pop %v1275
    %1284 = vrot.lane.b32.xlu0 %v1201, 32
    %v1285 = vpop.permute.xlu0 %1284
    %v1287 = vmul.f32 %v1281, %v1285
    %1289 = vrot.lane.b32.xlu0 %v1282, 64
    %v1290 = vpop.permute.xlu0 %1289
    %v1292 = vmul.f32 %v1281, %v1290
    %1294 = vrot.lane.b32.xlu0 %v1292, 32
    %v1295 = vpop.permute.xlu0 %1294
    %v1297 = vadd.f32 %v1287, %v1295
    %v1298 = vtanh.pop %v1297
    %1300 = vrot.lane.b32.xlu0 %v1298, 64
    %v1301 = vpop.permute.xlu0 %1300
    %v1303 = vmul.f32 %v1281, %v1301
    %1305 = vrot.lane.b32.xlu0 %v1303, 32
    %v1306 = vpop.permute.xlu0 %1305
    %v1307 = vsel %vm224, %v1306, 0
    %1309 = vmatprep.subr.mxu0 0.0
    %1310 = vmatpush1.msra.mxu0 %v1194
    %1311 = vmatprep.subr.mxu0 0.0
    %1312 = vmatpush1.msra.mxu0 %v1195
    %1313 = vmatprep.subr.mxu0 0.0
    %1314 = vmatpush1.msra.mxu0 %v1196
    %1315 = vmatprep.subr.mxu0 0.0
    %1316 = vmatpush1.msra.mxu0 %v1197
    %1317 = vmatprep.subr.mxu0 0.0
    %1318 = vmatpush1.msra.mxu0 0.0
    %1319 = vmatprep.subr.mxu0 0.0
    %1320 = vmatpush1.msra.mxu0 0.0
    %1321 = vmatprep.subr.mxu0 0.0
    %1322 = vmatpush1.msra.mxu0 0.0
    %1323 = vmatprep.subr.mxu0 0.0
    %1324 = vmatpush1.msra.mxu0 0.0
    %1325 = vmatprep.subr.mxu0 0.0
    %1326 = vmatpush1.msra.mxu0 0.0
    %1327 = vmatprep.subr.mxu0 0.0
    %1328 = vmatpush1.msra.mxu0 0.0
    %1329 = vmatprep.subr.mxu0 0.0
    %1330 = vmatpush1.msra.mxu0 0.0
    %1331 = vmatprep.subr.mxu0 0.0
    %1332 = vmatpush1.msra.mxu0 0.0
    %1333 = vmatprep.subr.mxu0 0.0
    %1334 = vmatpush1.msra.mxu0 0.0
    %1335 = vmatprep.subr.mxu0 0.0
    %1336 = vmatpush1.msra.mxu0 0.0
    %1337 = vmatprep.subr.mxu0 0.0
    %1338 = vmatpush1.msra.mxu0 0.0
    %1339 = vmatprep.subr.mxu0 0.0
    %1340 = vmatpush1.msra.mxu0 0.0
    %1341 = vmatprep.subr.mxu0 0.0
    %1342 = vmatpush1.msra.mxu0 0.0
    %1343 = vmatprep.subr.mxu0 0.0
    %1344 = vmatpush1.msra.mxu0 0.0
    %1345 = vmatprep.subr.mxu0 0.0
    %1346 = vmatpush1.msra.mxu0 0.0
    %1347 = vmatprep.subr.mxu0 0.0
    %1348 = vmatpush1.msra.mxu0 0.0
    %1349 = vmatprep.subr.mxu0 0.0
    %1350 = vmatpush1.msra.mxu0 0.0
    %1351 = vmatprep.subr.mxu0 0.0
    %1352 = vmatpush1.msra.mxu0 0.0
    %1353 = vmatprep.subr.mxu0 0.0
    %1354 = vmatpush1.msra.mxu0 0.0
    %1355 = vmatprep.subr.mxu0 0.0
    %1356 = vmatpush1.msra.mxu0 0.0
    %1357 = vmatprep.subr.mxu0 0.0
    %1358 = vmatpush1.msra.mxu0 0.0
    %1359 = vmatprep.subr.mxu0 0.0
    %1360 = vmatpush1.msra.mxu0 0.0
    %1361 = vmatprep.subr.mxu0 0.0
    %1362 = vmatpush1.msra.mxu0 0.0
    %1363 = vmatprep.subr.mxu0 0.0
    %1364 = vmatpush1.msra.mxu0 0.0
    %1365 = vmatprep.subr.mxu0 0.0
    %1366 = vmatpush1.msra.mxu0 0.0
    %1367 = vmatprep.subr.mxu0 0.0
    %1368 = vmatpush1.msra.mxu0 0.0
    %1369 = vmatprep.subr.mxu0 0.0
    %1370 = vmatpush1.msra.mxu0 0.0
    %1371 = vmatprep.subr.mxu0 0.0
    %1372 = vmatpush1.msra.mxu0 0.0
    %1373 = vmatprep.mubr.f32.mxu0 0.0
    %1374 = vmatmul.mubr.f32.gmra.mrb[0].mxu0 %v1307
    %v1375 = vpop.f32.mrb[0].mxu0
    %v1376 = vadd.f32 0.0, %v1375
    %v1377 = vpop.f32.mrb[0].mxu0
    %1378 = vdwg.mxu0
    %v1379 = vadd.f32 %v1161, %v1376
    %v1380 = vxor.u32 %v1379, 2147483648
    %v1381 = vmul.f32 %v1380, 1.442695
    %v1382 = vpow.pop %v1381
    %v1383 = vadd.f32 %v1382, 1.0
    %v1384 = vrcp.pop %v1383
    %v1385 = vmul.f32 1.0, %v1384
    %v1386 = vtanh.pop %v1379
    %v1387 = vmul.f32 %v1385, %v1297
    %1389 = vrot.lane.b32.xlu0 %v1386, 64
    %v1390 = vpop.permute.xlu0 %1389
    %v1392 = vmul.f32 %v1385, %v1390
    %1394 = vrot.lane.b32.xlu0 %v1392, 32
    %v1395 = vpop.permute.xlu0 %1394
    %v1397 = vadd.f32 %v1387, %v1395
    %v1398 = vtanh.pop %v1397
    %1400 = vrot.lane.b32.xlu0 %v1398, 64
    %v1401 = vpop.permute.xlu0 %1400
    %v1403 = vmul.f32 %v1385, %v1401
    %1405 = vrot.lane.b32.xlu0 %v1403, 32
    %v1406 = vpop.permute.xlu0 %1405
    %v1407 = vsel %vm224, %v1406, 0
    %1409 = vmatprep.subr.mxu0 0.0
    %1410 = vmatpush1.msra.mxu0 %v1194
    %1411 = vmatprep.subr.mxu0 0.0
    %1412 = vmatpush1.msra.mxu0 %v1195
    %1413 = vmatprep.subr.mxu0 0.0
    %1414 = vmatpush1.msra.mxu0 %v1196
    %1415 = vmatprep.subr.mxu0 0.0
    %1416 = vmatpush1.msra.mxu0 %v1197
    %1417 = vmatprep.subr.mxu0 0.0
    %1418 = vmatpush1.msra.mxu0 0.0
    %1419 = vmatprep.subr.mxu0 0.0
    %1420 = vmatpush1.msra.mxu0 0.0
    %1421 = vmatprep.subr.mxu0 0.0
    %1422 = vmatpush1.msra.mxu0 0.0
    %1423 = vmatprep.subr.mxu0 0.0
    %1424 = vmatpush1.msra.mxu0 0.0
    %1425 = vmatprep.subr.mxu0 0.0
    %1426 = vmatpush1.msra.mxu0 0.0
    %1427 = vmatprep.subr.mxu0 0.0
    %1428 = vmatpush1.msra.mxu0 0.0
    %1429 = vmatprep.subr.mxu0 0.0
    %1430 = vmatpush1.msra.mxu0 0.0
    %1431 = vmatprep.subr.mxu0 0.0
    %1432 = vmatpush1.msra.mxu0 0.0
    %1433 = vmatprep.subr.mxu0 0.0
    %1434 = vmatpush1.msra.mxu0 0.0
    %1435 = vmatprep.subr.mxu0 0.0
    %1436 = vmatpush1.msra.mxu0 0.0
    %1437 = vmatprep.subr.mxu0 0.0
    %1438 = vmatpush1.msra.mxu0 0.0
    %1439 = vmatprep.subr.mxu0 0.0
    %1440 = vmatpush1.msra.mxu0 0.0
    %1441 = vmatprep.subr.mxu0 0.0
    %1442 = vmatpush1.msra.mxu0 0.0
    %1443 = vmatprep.subr.mxu0 0.0
    %1444 = vmatpush1.msra.mxu0 0.0
    %1445 = vmatprep.subr.mxu0 0.0
    %1446 = vmatpush1.msra.mxu0 0.0
    %1447 = vmatprep.subr.mxu0 0.0
    %1448 = vmatpush1.msra.mxu0 0.0
    %1449 = vmatprep.subr.mxu0 0.0
    %1450 = vmatpush1.msra.mxu0 0.0
    %1451 = vmatprep.subr.mxu0 0.0
    %1452 = vmatpush1.msra.mxu0 0.0
    %1453 = vmatprep.subr.mxu0 0.0
    %1454 = vmatpush1.msra.mxu0 0.0
    %1455 = vmatprep.subr.mxu0 0.0
    %1456 = vmatpush1.msra.mxu0 0.0
    %1457 = vmatprep.subr.mxu0 0.0
    %1458 = vmatpush1.msra.mxu0 0.0
    %1459 = vmatprep.subr.mxu0 0.0
    %1460 = vmatpush1.msra.mxu0 0.0
    %1461 = vmatprep.subr.mxu0 0.0
    %1462 = vmatpush1.msra.mxu0 0.0
    %1463 = vmatprep.subr.mxu0 0.0
    %1464 = vmatpush1.msra.mxu0 0.0
    %1465 = vmatprep.subr.mxu0 0.0
    %1466 = vmatpush1.msra.mxu0 0.0
    %1467 = vmatprep.subr.mxu0 0.0
    %1468 = vmatpush1.msra.mxu0 0.0
    %1469 = vmatprep.subr.mxu0 0.0
    %1470 = vmatpush1.msra.mxu0 0.0
    %1471 = vmatprep.subr.mxu0 0.0
    %1472 = vmatpush1.msra.mxu0 0.0
    %1473 = vmatprep.mubr.f32.mxu0 0.0
    %1474 = vmatmul.mubr.f32.gmra.mrb[0].mxu0 %v1407
    %v1475 = vpop.f32.mrb[0].mxu0
    %v1476 = vadd.f32 0.0, %v1475
    %v1477 = vpop.f32.mrb[0].mxu0
    %1478 = vdwg.mxu0
    %v1479 = vadd.f32 %v1166, %v1476
    %v1480 = vxor.u32 %v1479, 2147483648
    %v1481 = vmul.f32 %v1480, 1.442695
    %v1482 = vpow.pop %v1481
    %v1483 = vadd.f32 %v1482, 1.0
    %v1484 = vrcp.pop %v1483
    %v1485 = vmul.f32 1.0, %v1484
    %v1486 = vtanh.pop %v1479
    %v1487 = vmul.f32 %v1485, %v1397
    %1489 = vrot.lane.b32.xlu0 %v1486, 64
    %v1490 = vpop.permute.xlu0 %1489
    %v1492 = vmul.f32 %v1485, %v1490
    %1494 = vrot.lane.b32.xlu0 %v1492, 32
    %v1495 = vpop.permute.xlu0 %1494
    %v1497 = vadd.f32 %v1487, %v1495
    %v1498 = vtanh.pop %v1497
    %1500 = vrot.lane.b32.xlu0 %v1498, 64
    %v1501 = vpop.permute.xlu0 %1500
    %v1503 = vmul.f32 %v1485, %v1501
    %1505 = vrot.lane.b32.xlu0 %v1503, 32
    %v1506 = vpop.permute.xlu0 %1505
    %v1507 = vsel %vm224, %v1506, 0
    %1509 = vmatprep.subr.mxu0 0.0
    %1510 = vmatpush1.msra.mxu0 %v1194
    %1511 = vmatprep.subr.mxu0 0.0
    %1512 = vmatpush1.msra.mxu0 %v1195
    %1513 = vmatprep.subr.mxu0 0.0
    %1514 = vmatpush1.msra.mxu0 %v1196
    %1515 = vmatprep.subr.mxu0 0.0
    %1516 = vmatpush1.msra.mxu0 %v1197
    %1517 = vmatprep.subr.mxu0 0.0
    %1518 = vmatpush1.msra.mxu0 0.0
    %1519 = vmatprep.subr.mxu0 0.0
    %1520 = vmatpush1.msra.mxu0 0.0
    %1521 = vmatprep.subr.mxu0 0.0
    %1522 = vmatpush1.msra.mxu0 0.0
    %1523 = vmatprep.subr.mxu0 0.0
    %1524 = vmatpush1.msra.mxu0 0.0
    %1525 = vmatprep.subr.mxu0 0.0
    %1526 = vmatpush1.msra.mxu0 0.0
    %1527 = vmatprep.subr.mxu0 0.0
    %1528 = vmatpush1.msra.mxu0 0.0
    %1529 = vmatprep.subr.mxu0 0.0
    %1530 = vmatpush1.msra.mxu0 0.0
    %1531 = vmatprep.subr.mxu0 0.0
    %1532 = vmatpush1.msra.mxu0 0.0
    %1533 = vmatprep.subr.mxu0 0.0
    %1534 = vmatpush1.msra.mxu0 0.0
    %1535 = vmatprep.subr.mxu0 0.0
    %1536 = vmatpush1.msra.mxu0 0.0
    %1537 = vmatprep.subr.mxu0 0.0
    %1538 = vmatpush1.msra.mxu0 0.0
    %1539 = vmatprep.subr.mxu0 0.0
    %1540 = vmatpush1.msra.mxu0 0.0
    %1541 = vmatprep.subr.mxu0 0.0
    %1542 = vmatpush1.msra.mxu0 0.0
    %1543 = vmatprep.subr.mxu0 0.0
    %1544 = vmatpush1.msra.mxu0 0.0
    %1545 = vmatprep.subr.mxu0 0.0
    %1546 = vmatpush1.msra.mxu0 0.0
    %1547 = vmatprep.subr.mxu0 0.0
    %1548 = vmatpush1.msra.mxu0 0.0
    %1549 = vmatprep.subr.mxu0 0.0
    %1550 = vmatpush1.msra.mxu0 0.0
    %1551 = vmatprep.subr.mxu0 0.0
    %1552 = vmatpush1.msra.mxu0 0.0
    %1553 = vmatprep.subr.mxu0 0.0
    %1554 = vmatpush1.msra.mxu0 0.0
    %1555 = vmatprep.subr.mxu0 0.0
    %1556 = vmatpush1.msra.mxu0 0.0
    %1557 = vmatprep.subr.mxu0 0.0
    %1558 = vmatpush1.msra.mxu0 0.0
    %1559 = vmatprep.subr.mxu0 0.0
    %1560 = vmatpush1.msra.mxu0 0.0
    %1561 = vmatprep.subr.mxu0 0.0
    %1562 = vmatpush1.msra.mxu0 0.0
    %1563 = vmatprep.subr.mxu0 0.0
    %1564 = vmatpush1.msra.mxu0 0.0
    %1565 = vmatprep.subr.mxu0 0.0
    %1566 = vmatpush1.msra.mxu0 0.0
    %1567 = vmatprep.subr.mxu0 0.0
    %1568 = vmatpush1.msra.mxu0 0.0
    %1569 = vmatprep.subr.mxu0 0.0
    %1570 = vmatpush1.msra.mxu0 0.0
    %1571 = vmatprep.subr.mxu0 0.0
    %1572 = vmatpush1.msra.mxu0 0.0
    %1573 = vmatprep.mubr.f32.mxu0 0.0
    %1574 = vmatmul.mubr.f32.gmra.mrb[0].mxu0 %v1507
    %v1575 = vpop.f32.mrb[0].mxu0
    %v1576 = vadd.f32 0.0, %v1575
    %v1577 = vpop.f32.mrb[0].mxu0
    %1578 = vdwg.mxu0
    %v1579 = vadd.f32 %v1171, %v1576
    %v1580 = vxor.u32 %v1579, 2147483648
    %v1581 = vmul.f32 %v1580, 1.442695
    %v1582 = vpow.pop %v1581
    %v1583 = vadd.f32 %v1582, 1.0
    %v1584 = vrcp.pop %v1583
    %v1585 = vmul.f32 1.0, %v1584
    %v1586 = vtanh.pop %v1579
    %v1587 = vmul.f32 %v1585, %v1497
    %1589 = vrot.lane.b32.xlu0 %v1586, 64
    %v1590 = vpop.permute.xlu0 %1589
    %v1592 = vmul.f32 %v1585, %v1590
    %1594 = vrot.lane.b32.xlu0 %v1592, 32
    %v1595 = vpop.permute.xlu0 %1594
    %v1597 = vadd.f32 %v1587, %v1595
    %v1598 = vtanh.pop %v1597
    %1600 = vrot.lane.b32.xlu0 %v1598, 64
    %v1601 = vpop.permute.xlu0 %1600
    %v1603 = vmul.f32 %v1585, %v1601
    %1605 = vrot.lane.b32.xlu0 %v1603, 32
    %v1606 = vpop.permute.xlu0 %1605
    %v1607 = vsel %vm224, %v1606, 0
    %1609 = vmatprep.subr.mxu0 0.0
    %1610 = vmatpush1.msra.mxu0 %v1194
    %1611 = vmatprep.subr.mxu0 0.0
    %1612 = vmatpush1.msra.mxu0 %v1195
    %1613 = vmatprep.subr.mxu0 0.0
    %1614 = vmatpush1.msra.mxu0 %v1196
    %1615 = vmatprep.subr.mxu0 0.0
    %1616 = vmatpush1.msra.mxu0 %v1197
    %1617 = vmatprep.subr.mxu0 0.0
    %1618 = vmatpush1.msra.mxu0 0.0
    %1619 = vmatprep.subr.mxu0 0.0
    %1620 = vmatpush1.msra.mxu0 0.0
    %1621 = vmatprep.subr.mxu0 0.0
    %1622 = vmatpush1.msra.mxu0 0.0
    %1623 = vmatprep.subr.mxu0 0.0
    %1624 = vmatpush1.msra.mxu0 0.0
    %1625 = vmatprep.subr.mxu0 0.0
    %1626 = vmatpush1.msra.mxu0 0.0
    %1627 = vmatprep.subr.mxu0 0.0
    %1628 = vmatpush1.msra.mxu0 0.0
    %1629 = vmatprep.subr.mxu0 0.0
    %1630 = vmatpush1.msra.mxu0 0.0
    %1631 = vmatprep.subr.mxu0 0.0
    %1632 = vmatpush1.msra.mxu0 0.0
    %1633 = vmatprep.subr.mxu0 0.0
    %1634 = vmatpush1.msra.mxu0 0.0
    %1635 = vmatprep.subr.mxu0 0.0
    %1636 = vmatpush1.msra.mxu0 0.0
    %1637 = vmatprep.subr.mxu0 0.0
    %1638 = vmatpush1.msra.mxu0 0.0
    %1639 = vmatprep.subr.mxu0 0.0
    %1640 = vmatpush1.msra.mxu0 0.0
    %1641 = vmatprep.subr.mxu0 0.0
    %1642 = vmatpush1.msra.mxu0 0.0
    %1643 = vmatprep.subr.mxu0 0.0
    %1644 = vmatpush1.msra.mxu0 0.0
    %1645 = vmatprep.subr.mxu0 0.0
    %1646 = vmatpush1.msra.mxu0 0.0
    %1647 = vmatprep.subr.mxu0 0.0
    %1648 = vmatpush1.msra.mxu0 0.0
    %1649 = vmatprep.subr.mxu0 0.0
    %1650 = vmatpush1.msra.mxu0 0.0
    %1651 = vmatprep.subr.mxu0 0.0
    %1652 = vmatpush1.msra.mxu0 0.0
    %1653 = vmatprep.subr.mxu0 0.0
    %1654 = vmatpush1.msra.mxu0 0.0
    %1655 = vmatprep.subr.mxu0 0.0
    %1656 = vmatpush1.msra.mxu0 0.0
    %1657 = vmatprep.subr.mxu0 0.0
    %1658 = vmatpush1.msra.mxu0 0.0
    %1659 = vmatprep.subr.mxu0 0.0
    %1660 = vmatpush1.msra.mxu0 0.0
    %1661 = vmatprep.subr.mxu0 0.0
    %1662 = vmatpush1.msra.mxu0 0.0
    %1663 = vmatprep.subr.mxu0 0.0
    %1664 = vmatpush1.msra.mxu0 0.0
    %1665 = vmatprep.subr.mxu0 0.0
    %1666 = vmatpush1.msra.mxu0 0.0
    %1667 = vmatprep.subr.mxu0 0.0
    %1668 = vmatpush1.msra.mxu0 0.0
    %1669 = vmatprep.subr.mxu0 0.0
    %1670 = vmatpush1.msra.mxu0 0.0
    %1671 = vmatprep.subr.mxu0 0.0
    %1672 = vmatpush1.msra.mxu0 0.0
    %1673 = vmatprep.mubr.f32.mxu0 0.0
    %1674 = vmatmul.mubr.f32.gmra.mrb[0].mxu0 %v1607
    %v1675 = vpop.f32.mrb[0].mxu0
    %v1676 = vadd.f32 0.0, %v1675
    %v1677 = vpop.f32.mrb[0].mxu0
    %1678 = vdwg.mxu0
    %v1679 = vadd.f32 %v1176, %v1676
    %v1680 = vxor.u32 %v1679, 2147483648
    %v1681 = vmul.f32 %v1680, 1.442695
    %v1682 = vpow.pop %v1681
    %v1683 = vadd.f32 %v1682, 1.0
    %v1684 = vrcp.pop %v1683
    %v1685 = vmul.f32 1.0, %v1684
    %v1686 = vtanh.pop %v1679
    %v1687 = vmul.f32 %v1685, %v1597
    %1689 = vrot.lane.b32.xlu0 %v1686, 64
    %v1690 = vpop.permute.xlu0 %1689
    %v1692 = vmul.f32 %v1685, %v1690
    %1694 = vrot.lane.b32.xlu0 %v1692, 32
    %v1695 = vpop.permute.xlu0 %1694
    %v1697 = vadd.f32 %v1687, %v1695
    %v1698 = vtanh.pop %v1697
    %1700 = vrot.lane.b32.xlu0 %v1698, 64
    %v1701 = vpop.permute.xlu0 %1700
    %v1703 = vmul.f32 %v1685, %v1701
    %1705 = vrot.lane.b32.xlu0 %v1703, 32
    %v1706 = vpop.permute.xlu0 %1705
    %v1707 = vsel %vm224, %v1706, 0
    %1709 = vmatprep.subr.mxu0 0.0
    %1710 = vmatpush1.msra.mxu0 %v1194
    %1711 = vmatprep.subr.mxu0 0.0
    %1712 = vmatpush1.msra.mxu0 %v1195
    %1713 = vmatprep.subr.mxu0 0.0
    %1714 = vmatpush1.msra.mxu0 %v1196
    %1715 = vmatprep.subr.mxu0 0.0
    %1716 = vmatpush1.msra.mxu0 %v1197
    %1717 = vmatprep.subr.mxu0 0.0
    %1718 = vmatpush1.msra.mxu0 0.0
    %1719 = vmatprep.subr.mxu0 0.0
    %1720 = vmatpush1.msra.mxu0 0.0
    %1721 = vmatprep.subr.mxu0 0.0
    %1722 = vmatpush1.msra.mxu0 0.0
    %1723 = vmatprep.subr.mxu0 0.0
    %1724 = vmatpush1.msra.mxu0 0.0
    %1725 = vmatprep.subr.mxu0 0.0
    %1726 = vmatpush1.msra.mxu0 0.0
    %1727 = vmatprep.subr.mxu0 0.0
    %1728 = vmatpush1.msra.mxu0 0.0
    %1729 = vmatprep.subr.mxu0 0.0
    %1730 = vmatpush1.msra.mxu0 0.0
    %1731 = vmatprep.subr.mxu0 0.0
    %1732 = vmatpush1.msra.mxu0 0.0
    %1733 = vmatprep.subr.mxu0 0.0
    %1734 = vmatpush1.msra.mxu0 0.0
    %1735 = vmatprep.subr.mxu0 0.0
    %1736 = vmatpush1.msra.mxu0 0.0
    %1737 = vmatprep.subr.mxu0 0.0
    %1738 = vmatpush1.msra.mxu0 0.0
    %1739 = vmatprep.subr.mxu0 0.0
    %1740 = vmatpush1.msra.mxu0 0.0
    %1741 = vmatprep.subr.mxu0 0.0
    %1742 = vmatpush1.msra.mxu0 0.0
    %1743 = vmatprep.subr.mxu0 0.0
    %1744 = vmatpush1.msra.mxu0 0.0
    %1745 = vmatprep.subr.mxu0 0.0
    %1746 = vmatpush1.msra.mxu0 0.0
    %1747 = vmatprep.subr.mxu0 0.0
    %1748 = vmatpush1.msra.mxu0 0.0
    %1749 = vmatprep.subr.mxu0 0.0
    %1750 = vmatpush1.msra.mxu0 0.0
    %1751 = vmatprep.subr.mxu0 0.0
    %1752 = vmatpush1.msra.mxu0 0.0
    %1753 = vmatprep.subr.mxu0 0.0
    %1754 = vmatpush1.msra.mxu0 0.0
    %1755 = vmatprep.subr.mxu0 0.0
    %1756 = vmatpush1.msra.mxu0 0.0
    %1757 = vmatprep.subr.mxu0 0.0
    %1758 = vmatpush1.msra.mxu0 0.0
    %1759 = vmatprep.subr.mxu0 0.0
    %1760 = vmatpush1.msra.mxu0 0.0
    %1761 = vmatprep.subr.mxu0 0.0
    %1762 = vmatpush1.msra.mxu0 0.0
    %1763 = vmatprep.subr.mxu0 0.0
    %1764 = vmatpush1.msra.mxu0 0.0
    %1765 = vmatprep.subr.mxu0 0.0
    %1766 = vmatpush1.msra.mxu0 0.0
    %1767 = vmatprep.subr.mxu0 0.0
    %1768 = vmatpush1.msra.mxu0 0.0
    %1769 = vmatprep.subr.mxu0 0.0
    %1770 = vmatpush1.msra.mxu0 0.0
    %1771 = vmatprep.subr.mxu0 0.0
    %1772 = vmatpush1.msra.mxu0 0.0
    %1773 = vmatprep.mubr.f32.mxu0 0.0
    %1774 = vmatmul.mubr.f32.gmra.mrb[0].mxu0 %v1707
    %v1775 = vpop.f32.mrb[0].mxu0
    %v1776 = vadd.f32 0.0, %v1775
    %v1777 = vpop.f32.mrb[0].mxu0
    %1778 = vdwg.mxu0
    %v1779 = vadd.f32 %v1181, %v1776
    %v1780 = vxor.u32 %v1779, 2147483648
    %v1781 = vmul.f32 %v1780, 1.442695
    %v1782 = vpow.pop %v1781
    %v1783 = vadd.f32 %v1782, 1.0
    %v1784 = vrcp.pop %v1783
    %v1785 = vmul.f32 1.0, %v1784
    %v1786 = vtanh.pop %v1779
    %v1787 = vmul.f32 %v1785, %v1697
    %1789 = vrot.lane.b32.xlu0 %v1786, 64
    %v1790 = vpop.permute.xlu0 %1789
    %v1792 = vmul.f32 %v1785, %v1790
    %1794 = vrot.lane.b32.xlu0 %v1792, 32
    %v1795 = vpop.permute.xlu0 %1794
    %v1797 = vadd.f32 %v1787, %v1795
    %v1798 = vtanh.pop %v1797
    %1800 = vrot.lane.b32.xlu0 %v1798, 64
    %v1801 = vpop.permute.xlu0 %1800
    %v1803 = vmul.f32 %v1785, %v1801
    %1805 = vrot.lane.b32.xlu0 %v1803, 32
    %v1806 = vpop.permute.xlu0 %1805
    %v1807 = vsel %vm224, %v1806, 0
    %1809 = vmatprep.subr.mxu0 0.0
    %1810 = vmatpush1.msra.mxu0 %v1194
    %1811 = vmatprep.subr.mxu0 0.0
    %1812 = vmatpush1.msra.mxu0 %v1195
    %1813 = vmatprep.subr.mxu0 0.0
    %1814 = vmatpush1.msra.mxu0 %v1196
    %1815 = vmatprep.subr.mxu0 0.0
    %1816 = vmatpush1.msra.mxu0 %v1197
    %1817 = vmatprep.subr.mxu0 0.0
    %1818 = vmatpush1.msra.mxu0 0.0
    %1819 = vmatprep.subr.mxu0 0.0
    %1820 = vmatpush1.msra.mxu0 0.0
    %1821 = vmatprep.subr.mxu0 0.0
    %1822 = vmatpush1.msra.mxu0 0.0
    %1823 = vmatprep.subr.mxu0 0.0
    %1824 = vmatpush1.msra.mxu0 0.0
    %1825 = vmatprep.subr.mxu0 0.0
    %1826 = vmatpush1.msra.mxu0 0.0
    %1827 = vmatprep.subr.mxu0 0.0
    %1828 = vmatpush1.msra.mxu0 0.0
    %1829 = vmatprep.subr.mxu0 0.0
    %1830 = vmatpush1.msra.mxu0 0.0
    %1831 = vmatprep.subr.mxu0 0.0
    %1832 = vmatpush1.msra.mxu0 0.0
    %1833 = vmatprep.subr.mxu0 0.0
    %1834 = vmatpush1.msra.mxu0 0.0
    %1835 = vmatprep.subr.mxu0 0.0
    %1836 = vmatpush1.msra.mxu0 0.0
    %1837 = vmatprep.subr.mxu0 0.0
    %1838 = vmatpush1.msra.mxu0 0.0
    %1839 = vmatprep.subr.mxu0 0.0
    %1840 = vmatpush1.msra.mxu0 0.0
    %1841 = vmatprep.subr.mxu0 0.0
    %1842 = vmatpush1.msra.mxu0 0.0
    %1843 = vmatprep.subr.mxu0 0.0
    %1844 = vmatpush1.msra.mxu0 0.0
    %1845 = vmatprep.subr.mxu0 0.0
    %1846 = vmatpush1.msra.mxu0 0.0
    %1847 = vmatprep.subr.mxu0 0.0
    %1848 = vmatpush1.msra.mxu0 0.0
    %1849 = vmatprep.subr.mxu0 0.0
    %1850 = vmatpush1.msra.mxu0 0.0
    %1851 = vmatprep.subr.mxu0 0.0
    %1852 = vmatpush1.msra.mxu0 0.0
    %1853 = vmatprep.subr.mxu0 0.0
    %1854 = vmatpush1.msra.mxu0 0.0
    %1855 = vmatprep.subr.mxu0 0.0
    %1856 = vmatpush1.msra.mxu0 0.0
    %1857 = vmatprep.subr.mxu0 0.0
    %1858 = vmatpush1.msra.mxu0 0.0
    %1859 = vmatprep.subr.mxu0 0.0
    %1860 = vmatpush1.msra.mxu0 0.0
    %1861 = vmatprep.subr.mxu0 0.0
    %1862 = vmatpush1.msra.mxu0 0.0
    %1863 = vmatprep.subr.mxu0 0.0
    %1864 = vmatpush1.msra.mxu0 0.0
    %1865 = vmatprep.subr.mxu0 0.0
    %1866 = vmatpush1.msra.mxu0 0.0
    %1867 = vmatprep.subr.mxu0 0.0
    %1868 = vmatpush1.msra.mxu0 0.0
    %1869 = vmatprep.subr.mxu0 0.0
    %1870 = vmatpush1.msra.mxu0 0.0
    %1871 = vmatprep.subr.mxu0 0.0
    %1872 = vmatpush1.msra.mxu0 0.0
    %1873 = vmatprep.mubr.f32.mxu0 0.0
    %1874 = vmatmul.mubr.f32.gmra.mrb[0].mxu0 %v1807
    %v1875 = vpop.f32.mrb[0].mxu0
    %v1876 = vadd.f32 0.0, %v1875
    %v1877 = vpop.f32.mrb[0].mxu0
    %1878 = vdwg.mxu0
    %v1879 = vadd.f32 %v1186, %v1876
    %v1880 = vxor.u32 %v1879, 2147483648
    %v1881 = vmul.f32 %v1880, 1.442695
    %v1882 = vpow.pop %v1881
    %v1883 = vadd.f32 %v1882, 1.0
    %v1884 = vrcp.pop %v1883
    %v1885 = vmul.f32 1.0, %v1884
    %v1886 = vtanh.pop %v1879
    %v1887 = vmul.f32 %v1885, %v1797
    %1889 = vrot.lane.b32.xlu0 %v1886, 64
    %v1890 = vpop.permute.xlu0 %1889
    %v1892 = vmul.f32 %v1885, %v1890
    %1894 = vrot.lane.b32.xlu0 %v1892, 32
    %v1895 = vpop.permute.xlu0 %1894
    %v1897 = vadd.f32 %v1887, %v1895
    %v1898 = vtanh.pop %v1897
    %1900 = vrot.lane.b32.xlu0 %v1898, 64
    %v1901 = vpop.permute.xlu0 %1900
    %v1903 = vmul.f32 %v1885, %v1901
    %1905 = vrot.lane.b32.xlu0 %v1903, 32
    %v1906 = vpop.permute.xlu0 %1905
    %v1907 = vsel %vm224, %v1906, 0
    %1909 = vmatprep.subr.mxu0 0.0
    %1910 = vmatpush1.msra.mxu0 %v1194
    %1911 = vmatprep.subr.mxu0 0.0
    %1912 = vmatpush1.msra.mxu0 %v1195
    %1913 = vmatprep.subr.mxu0 0.0
    %1914 = vmatpush1.msra.mxu0 %v1196
    %1915 = vmatprep.subr.mxu0 0.0
    %1916 = vmatpush1.msra.mxu0 %v1197
    %1917 = vmatprep.subr.mxu0 0.0
    %1918 = vmatpush1.msra.mxu0 0.0
    %1919 = vmatprep.subr.mxu0 0.0
    %1920 = vmatpush1.msra.mxu0 0.0
    %1921 = vmatprep.subr.mxu0 0.0
    %1922 = vmatpush1.msra.mxu0 0.0
    %1923 = vmatprep.subr.mxu0 0.0
    %1924 = vmatpush1.msra.mxu0 0.0
    %1925 = vmatprep.subr.mxu0 0.0
    %1926 = vmatpush1.msra.mxu0 0.0
    %1927 = vmatprep.subr.mxu0 0.0
    %1928 = vmatpush1.msra.mxu0 0.0
    %1929 = vmatprep.subr.mxu0 0.0
    %1930 = vmatpush1.msra.mxu0 0.0
    %1931 = vmatprep.subr.mxu0 0.0
    %1932 = vmatpush1.msra.mxu0 0.0
    %1933 = vmatprep.subr.mxu0 0.0
    %1934 = vmatpush1.msra.mxu0 0.0
    %1935 = vmatprep.subr.mxu0 0.0
    %1936 = vmatpush1.msra.mxu0 0.0
    %1937 = vmatprep.subr.mxu0 0.0
    %1938 = vmatpush1.msra.mxu0 0.0
    %1939 = vmatprep.subr.mxu0 0.0
    %1940 = vmatpush1.msra.mxu0 0.0
    %1941 = vmatprep.subr.mxu0 0.0
    %1942 = vmatpush1.msra.mxu0 0.0
    %1943 = vmatprep.subr.mxu0 0.0
    %1944 = vmatpush1.msra.mxu0 0.0
    %1945 = vmatprep.subr.mxu0 0.0
    %1946 = vmatpush1.msra.mxu0 0.0
    %1947 = vmatprep.subr.mxu0 0.0
    %1948 = vmatpush1.msra.mxu0 0.0
    %1949 = vmatprep.subr.mxu0 0.0
    %1950 = vmatpush1.msra.mxu0 0.0
    %1951 = vmatprep.subr.mxu0 0.0
    %1952 = vmatpush1.msra.mxu0 0.0
    %1953 = vmatprep.subr.mxu0 0.0
    %1954 = vmatpush1.msra.mxu0 0.0
    %1955 = vmatprep.subr.mxu0 0.0
    %1956 = vmatpush1.msra.mxu0 0.0
    %1957 = vmatprep.subr.mxu0 0.0
    %1958 = vmatpush1.msra.mxu0 0.0
    %1959 = vmatprep.subr.mxu0 0.0
    %1960 = vmatpush1.msra.mxu0 0.0
    %1961 = vmatprep.subr.mxu0 0.0
    %1962 = vmatpush1.msra.mxu0 0.0
    %1963 = vmatprep.subr.mxu0 0.0
    %1964 = vmatpush1.msra.mxu0 0.0
    %1965 = vmatprep.subr.mxu0 0.0
    %1966 = vmatpush1.msra.mxu0 0.0
    %1967 = vmatprep.subr.mxu0 0.0
    %1968 = vmatpush1.msra.mxu0 0.0
    %1969 = vmatprep.subr.mxu0 0.0
    %1970 = vmatpush1.msra.mxu0 0.0
    %1971 = vmatprep.subr.mxu0 0.0
    %1972 = vmatpush1.msra.mxu0 0.0
    %1973 = vmatprep.mubr.f32.mxu0 0.0
    %1974 = vmatmul.mubr.f32.gmra.mrb[0].mxu0 %v1907
    %v1975 = vpop.f32.mrb[0].mxu0
    %v1976 = vadd.f32 0.0, %v1975
    %v1977 = vpop.f32.mrb[0].mxu0
    %1978 = vdwg.mxu0
    %v1979 = vadd.f32 %v1191, %v1976
    %v1980 = vxor.u32 %v1979, 2147483648
    %v1981 = vmul.f32 %v1980, 1.442695
    %v1982 = vpow.pop %v1981
    %v1983 = vadd.f32 %v1982, 1.0
    %v1984 = vrcp.pop %v1983
    %v1985 = vmul.f32 1.0, %v1984
    %v1986 = vtanh.pop %v1979
    %v1987 = vmul.f32 %v1985, %v1897
    %1989 = vrot.lane.b32.xlu0 %v1986, 64
    %v1990 = vpop.permute.xlu0 %1989
    %v1992 = vmul.f32 %v1985, %v1990
    %1994 = vrot.lane.b32.xlu0 %v1992, 32
    %v1995 = vpop.permute.xlu0 %1994
    %v1997 = vadd.f32 %v1987, %v1995
    %v1998 = vtanh.pop %v1997
    %2000 = vrot.lane.b32.xlu0 %v1998, 64
    %v2001 = vpop.permute.xlu0 %2000
    %v2003 = vmul.f32 %v1985, %v2001
    %v2004 = vld [vmem:[%s9] sm:$0xff]
    %v2005 = vld [vmem:[%s9 + $0x8] sm:$0xff]
    %v2006 = vld [vmem:[%s9 + $0x10] sm:$0xff]
    %v2007 = vld [vmem:[%s9 + $0x18] sm:$0xff]
    %v2008 = vld [vmem:[%s10] sm:$0x1]
    %v2010 = vlaneseq
    %v2011 = vshrl.u32 %v2010, 7
    %v2012 = vsub.s32 0, %v2011
    %v2013 = vrot.slane %v2008, %v2012
    %2016 = vrot.lane.b32.xlu0 %v2003, 32
    %v2017 = vpop.permute.xlu0 %2016
    %v2018 = vsel %vm224, %v2017, 0
    %2020 = vmatprep.subr.mxu0 0.0
    %2021 = vmatpush1.msra.mxu0 %v2004
    %2022 = vmatprep.subr.mxu0 0.0
    %2023 = vmatpush1.msra.mxu0 %v2005
    %2024 = vmatprep.subr.mxu0 0.0
    %2025 = vmatpush1.msra.mxu0 %v2006
    %2026 = vmatprep.subr.mxu0 0.0
    %2027 = vmatpush1.msra.mxu0 %v2007
    %2028 = vmatprep.subr.mxu0 0.0
    %2029 = vmatpush1.msra.mxu0 0.0
    %2030 = vmatprep.subr.mxu0 0.0
    %2031 = vmatpush1.msra.mxu0 0.0
    %2032 = vmatprep.subr.mxu0 0.0
    %2033 = vmatpush1.msra.mxu0 0.0
    %2034 = vmatprep.subr.mxu0 0.0
    %2035 = vmatpush1.msra.mxu0 0.0
    %2036 = vmatprep.subr.mxu0 0.0
    %2037 = vmatpush1.msra.mxu0 0.0
    %2038 = vmatprep.subr.mxu0 0.0
    %2039 = vmatpush1.msra.mxu0 0.0
    %2040 = vmatprep.subr.mxu0 0.0
    %2041 = vmatpush1.msra.mxu0 0.0
    %2042 = vmatprep.subr.mxu0 0.0
    %2043 = vmatpush1.msra.mxu0 0.0
    %2044 = vmatprep.subr.mxu0 0.0
    %2045 = vmatpush1.msra.mxu0 0.0
    %2046 = vmatprep.subr.mxu0 0.0
    %2047 = vmatpush1.msra.mxu0 0.0
    %2048 = vmatprep.subr.mxu0 0.0
    %2049 = vmatpush1.msra.mxu0 0.0
    %2050 = vmatprep.subr.mxu0 0.0
    %2051 = vmatpush1.msra.mxu0 0.0
    %2052 = vmatprep.subr.mxu0 0.0
    %2053 = vmatpush1.msra.mxu0 0.0
    %2054 = vmatprep.subr.mxu0 0.0
    %2055 = vmatpush1.msra.mxu0 0.0
    %2056 = vmatprep.subr.mxu0 0.0
    %2057 = vmatpush1.msra.mxu0 0.0
    %2058 = vmatprep.subr.mxu0 0.0
    %2059 = vmatpush1.msra.mxu0 0.0
    %2060 = vmatprep.subr.mxu0 0.0
    %2061 = vmatpush1.msra.mxu0 0.0
    %2062 = vmatprep.subr.mxu0 0.0
    %2063 = vmatpush1.msra.mxu0 0.0
    %2064 = vmatprep.subr.mxu0 0.0
    %2065 = vmatpush1.msra.mxu0 0.0
    %2066 = vmatprep.subr.mxu0 0.0
    %2067 = vmatpush1.msra.mxu0 0.0
    %2068 = vmatprep.subr.mxu0 0.0
    %2069 = vmatpush1.msra.mxu0 0.0
    %2070 = vmatprep.subr.mxu0 0.0
    %2071 = vmatpush1.msra.mxu0 0.0
    %2072 = vmatprep.subr.mxu0 0.0
    %2073 = vmatpush1.msra.mxu0 0.0
    %2074 = vmatprep.subr.mxu0 0.0
    %2075 = vmatpush1.msra.mxu0 0.0
    %2076 = vmatprep.subr.mxu0 0.0
    %2077 = vmatpush1.msra.mxu0 0.0
    %2078 = vmatprep.subr.mxu0 0.0
    %2079 = vmatpush1.msra.mxu0 0.0
    %2080 = vmatprep.subr.mxu0 0.0
    %2081 = vmatpush1.msra.mxu0 0.0
    %2082 = vmatprep.subr.mxu0 0.0
    %2083 = vmatpush1.msra.mxu0 0.0
    %2084 = vmatprep.mubr.f32.mxu0 0.0
    %2085 = vmatmul.mubr.f32.gmra.mrb[0].mxu0 %v2018
    %v2086 = vpop.f32.mrb[0].mxu0
    %v2087 = vadd.f32 %v2013, %v2086
    %v2088 = vpop.f32.mrb[0].mxu0
    %2089 = vdwg.mxu0
    %2090 = vst.msk [vmem:[#allocation8] sm:$0xff] %vm88, %v2087
    %2091 = vst.msk [vmem:[#allocation9] sm:$0xff] %vm224, %v1043
    %s2093 = scalar_lea.vmem [#allocation9], 8
    %2094 = vst.msk [vmem:[%s2093] sm:$0xff] %vm224, %v2017
    %2096 = vrot.lane.b32.xlu0 %v1034, 96
    %v2097 = vpop.permute.xlu0 %2096
    %2099 = vst.msk [vmem:[#allocation11] sm:$0xff] %vm224, %v2097
    %2101 = vrot.lane.b32.xlu0 %v1997, 96
    %v2102 = vpop.permute.xlu0 %2101
    %s2104 = scalar_lea.vmem [#allocation11], 8
    %2105 = vst.msk [vmem:[%s2104] sm:$0xff] %vm224, %v2102
    // Predicated region
    $region54: #{tpu_custom_call.1} parent=1 // pred_check
      _
    $region55: #{tpu_custom_call.1} parent=1 // pred_check_branch
      %2107 = sbr.rel (0) target = $region57
    $region56: #{tpu_custom_call.1} parent=1 // pred_region
      %s2109 = ssub.s32 128, 128
      %2110 = vsyncadd [#allocation5], %s2109
      %s2112 = sshll.u32 [#allocation8], 4
      %s2113 = int_to_ptr.vmem [resolvable:$true] %s2112
      %2115 = dma.vmem_to_hbm [thread:$0]  %s2113, 128, %s11, [#allocation5]
    $region57: #{tpu_custom_call.1} parent=1 // pred_fallthru
      _
    // Predicated region
    $region58: #{tpu_custom_call.1} parent=1 // pred_check
      _
    $region59: #{tpu_custom_call.1} parent=1 // pred_check_branch
      %2117 = sbr.rel (0) target = $region61
    $region60: #{tpu_custom_call.1} parent=1 // pred_region
      %s2119 = ssub.s32 256, 256
      %2120 = vsyncadd [#allocation10], %s2119
      %s2121 = sshll.u32 [#allocation9], 4
      %s2122 = int_to_ptr.vmem [resolvable:$true] %s2121
      %2127 = dma.vmem_to_hbm [thread:$0]  %s2122, 256, %s12, [#allocation10], 128, 128, 8
    $region61: #{tpu_custom_call.1} parent=1 // pred_fallthru
      _
    // Predicated region
    $region62: #{tpu_custom_call.1} parent=1 // pred_check
      _
    $region63: #{tpu_custom_call.1} parent=1 // pred_check_branch
      %2129 = sbr.rel (0) target = $region65
    $region64: #{tpu_custom_call.1} parent=1 // pred_region
      %s2131 = ssub.s32 256, 256
      %2132 = vsyncadd [#allocation10], %s2131
      %s2133 = sshll.u32 [#allocation11], 4
      %s2134 = int_to_ptr.vmem [resolvable:$true] %s2133
      %2139 = dma.vmem_to_hbm [thread:$0]  %s2134, 256, %s13, [#allocation10], 128, 128, 8
    $region65: #{tpu_custom_call.1} parent=1 // pred_fallthru
      _
    // Predicated region
    $region66: #{tpu_custom_call.1} parent=1 // pred_check
      _
    $region67: #{tpu_custom_call.1} parent=1 // pred_check_branch
      %2141 = sbr.rel (0) target = $region69
    $region68: #{tpu_custom_call.1} parent=1 // pred_region
      %2142 = dma.done [#allocation5], 128
    $region69: #{tpu_custom_call.1} parent=1 // pred_fallthru
      _
    // Predicated region
    $region70: #{tpu_custom_call.1} parent=1 // pred_check
      _
    $region71: #{tpu_custom_call.1} parent=1 // pred_check_branch
      %2144 = sbr.rel (0) target = $region73
    $region72: #{tpu_custom_call.1} parent=1 // pred_region
      %2145 = dma.done [#allocation10], 256
    $region73: #{tpu_custom_call.1} parent=1 // pred_fallthru
      _
    // Predicated region
    $region74: #{tpu_custom_call.1} parent=1 // pred_check
      _
    $region75: #{tpu_custom_call.1} parent=1 // pred_check_branch
      %2147 = sbr.rel (0) target = $region77
    $region76: #{tpu_custom_call.1} parent=1 // pred_region
      %2148 = dma.done [#allocation10], 256
    $region77: #{tpu_custom_call.1} parent=1 // pred_fallthru
      _
    %2149 = vsyncpa [#allocation4], 1
    %2150 = vsyncpa [#allocation7], 1
    %2151 = vsyncpa [#allocation5], 1
    %2152 = vsyncpa [#allocation10], 1

</llo_original>
